<compile_context>
chip_gen: v7x
topology: tpu7x:2x2x1
jax: 0.10.0
libtpu: 0.0.40
codegen_flags: <defaults>
</compile_context>

<pallas_src>
import functools

import jax
import jax.numpy as jnp
from jax.experimental import pallas as pl
from jax.experimental.pallas import tpu as pltpu


# ----------------------------- Pallas kernel -------------------------------


def _mnist_cnn_kernel(x_ref, t1_ref, t2_ref, t3_ref, b1_ref, b2_ref, b3_ref,
                      ap_ref, o_ref, *, bt):
    """Fused conv1->relu->conv2->relu->conv3->relu->avgpool for one batch tile.

    x_ref : (28, bt, 28)          images, layout (H, batch, W*Cin) with Cin = 1
    tN_ref: (3, Wi*Ci, Wo*Co)     lowered conv weights (one matrix per kernel row kh),
                                  Wo*Co padded to a multiple of 128 (zero columns)
    bN_ref: (1, Wo*Co)            bias tiled over Wo (zero in padded positions)
    ap_ref: (128, 10)             averaging matrix for the global 4x4 pool (incl. /16)
    o_ref : (bt, 10)
    """
    f32 = jnp.float32

    def conv3x3_s2(x, t_ref, b_ref, hi, ho, w, n):
        # x: (hi, bt, w) -> (ho, bt, n).  3x3 / stride-2 / pad-1 conv lowered to three
        # MXU matmuls (one per kernel row kh); the W taps and channel mixing live in
        # the precomputed lowered weight t_ref[kh] of shape (w, n).
        if hi != 2 * ho:
            # Odd input height (conv3 only): the kh=2 tap of the last output row reads
            # exactly one zero row below the image.
            x = jnp.concatenate([x, jnp.zeros((2 * ho - hi, bt, w), f32)], axis=0)
        xr = x.reshape(ho, 2, bt, w)          # free major-dim parity split
        xe = xr[:, 0]                         # input rows 0, 2, ..., 2*ho-2
        xo = xr[:, 1]                         # input rows 1, 3, ..., 2*ho-1
        m = ho * bt
        # kh=1 (rows 2o) and kh=2 (rows 2o+1) cover every output row with no padding;
        # initialize the accumulator from the first matmul (no zero-fill + add).
        acc = jnp.dot(xe.reshape(m, w), t_ref[1], preferred_element_type=f32)
        acc = acc + jnp.dot(xo.reshape(m, w), t_ref[2], preferred_element_type=f32)
        # kh=0 (rows 2o-1): output row 0 reads the zero pad row above the image,
        # output row o>=1 reads odd row 2o-1 = xo[o-1].  Only one zero row is built.
        tap0 = jnp.concatenate([jnp.zeros((1, bt, w), f32), xo[:ho - 1]], axis=0)
        acc = acc + jnp.dot(tap0.reshape(m, w), t_ref[0], preferred_element_type=f32)
        acc = jnp.maximum(acc + b_ref[...], 0.0)      # bias + ReLU (padded lanes stay 0)
        return acc.reshape(ho, bt, n)

    x0 = x_ref[...].astype(f32)                                   # (28, bt, 28)
    y1 = conv3x3_s2(x0, t1_ref, b1_ref, 28, 14, 28, 256)          # (14, bt, 256)
    y2 = conv3x3_s2(y1, t2_ref, b2_ref, 14, 7, 256, 128)          # (7,  bt, 128)
    y3 = conv3x3_s2(y2, t3_ref, b3_ref, 7, 4, 128, 128)           # (4,  bt, 128)
    # Global 4x4 average pool: sum the 4 output rows (major dim), then one matmul with
    # the (128, 10) averaging matrix does the Wo sum, the 1/16 scale, and drops the
    # padded channels, all on the MXU.
    pooled = jnp.dot(jnp.sum(y3, axis=0), ap_ref[...], preferred_element_type=f32)
    o_ref[...] = pooled.astype(o_ref.dtype)                       # (bt, 10)


# ------------------------------- JAX glue ----------------------------------


def _lower_conv_weights(w, wi, wo, *, wi_pad=None, wo_pad=None, co_pad=None):
    """(Co, Ci, 3, 3) PyTorch conv weight -> (3, wi_pad*Ci, wo_pad*co_pad) per-kh matrices.

    T[kh, wi*Ci + ci, wo*co_pad + co] = w[co, ci, kh, kw] with kw = wi - 2*wo + 1
    (zero when kw is outside [0, 3) or when (wi, wo, co) is a padded position).  This
    folds the stride-2 W taps and the channel mixing of a 3x3/stride-2/pad-1 conv into
    one matmul per kernel row kh, with the output lane width padded to 128 multiples.
    """
    co, ci, _, _ = w.shape
    wi_pad = wi if wi_pad is None else wi_pad
    wo_pad = wo if wo_pad is None else wo_pad
    co_pad = co if co_pad is None else co_pad
    k = jnp.arange(3)[:, None, None]
    wi_idx = jnp.arange(wi)[None, :, None]
    wo_idx = jnp.arange(wo)[None, None, :]
    sel = (wi_idx == 2 * wo_idx + k - 1).astype(w.dtype)          # (3, wi, wo)
    t = jnp.einsum('kwv,ochk->hwcvo', sel, w)                     # (3, wi, ci, wo, co)
    t = jnp.pad(t, ((0, 0), (0, wi_pad - wi), (0, 0),
                    (0, wo_pad - wo), (0, co_pad - co)))
    return t.reshape(3, wi_pad * ci, wo_pad * co_pad)


def _lower_bias(b, wo, *, wo_pad=None, co_pad=None):
    """(Co,) bias -> (1, wo_pad*co_pad), zero in padded Wo / Co positions."""
    co = b.shape[0]
    wo_pad = wo if wo_pad is None else wo_pad
    co_pad = co if co_pad is None else co_pad
    bb = jnp.zeros((wo_pad, co_pad), b.dtype)
    bb = bb.at[:wo, :co].set(jnp.broadcast_to(b[None, :], (wo, co)))
    return bb.reshape(1, wo_pad * co_pad)


def prepare_mnist_cnn(params):
    """Lower the PyTorch-layout parameters once per parameter set (hoisted)."""
    dtype = params["w1"].dtype
    t1 = _lower_conv_weights(params["w1"], 28, 14, wo_pad=16)               # (3, 28, 256)
    t2 = _lower_conv_weights(params["w2"], 14, 7, wi_pad=16, wo_pad=8)      # (3, 256, 128)
    t3 = _lower_conv_weights(params["w3"], 7, 4, wi_pad=8, co_pad=32)       # (3, 128, 128)
    b1 = _lower_bias(params["b1"], 14, wo_pad=16)                           # (1, 256)
    b2 = _lower_bias(params["b2"], 7, wo_pad=8)                             # (1, 128)
    b3 = _lower_bias(params["b3"], 4, co_pad=32)                            # (1, 128)
    blk = jnp.zeros((32, 10), dtype).at[:10, :].set(jnp.eye(10, dtype=dtype) / 16.0)
    ap = jnp.tile(blk, (4, 1))                                              # (128, 10)
    return dict(t1=t1, t2=t2, t3=t3, b1=b1, b2=b2, b3=b3, ap=ap)


def _tpu_vmem_capacity_bytes():
    try:
        info = pltpu.get_tpu_info()
        for attr in ("vmem_capacity_bytes", "vmem_size_bytes", "vmem_bytes"):
            v = getattr(info, attr, None)
            if v:
                return int(v)
    except Exception:
        pass
    return 64 * 1024 * 1024  # conservative: assume v7x-class (64 MiB / TensorCore)


def _tile_config(B):
    """Generation-aware batch tile, padded batch, and VMEM budget."""
    vmem_cap = _tpu_vmem_capacity_bytes()
    if vmem_cap >= 100 * 1024 * 1024:
        # v5e / v6e: 128 MiB VMEM, single TensorCore -> biggest tiles, generous limit.
        bt_cap, vmem_limit, want_two_steps = 512, 100 * 1024 * 1024, False
    else:
        # v7x-class: 64 MiB VMEM, 2 TensorCores -> keep headroom and prefer >= 2 grid
        # steps so the "parallel" batch axis shards across both cores.
        bt_cap, vmem_limit, want_two_steps = 256, 48 * 1024 * 1024, True
    b8 = ((B + 7) // 8) * 8                       # sublane-aligned batch
    bt = min(bt_cap, b8)
    if want_two_steps and b8 // bt < 2 and bt > 8:
        bt = max(8, ((b8 // 2 + 7) // 8) * 8)
    b_pad = ((B + bt - 1) // bt) * bt
    return bt, b_pad, vmem_limit


def mnist_cnn_forward(xb, lowered):
    """xb: (B, 784) float32 (flattened MNIST images). Returns (B, 10)."""
    B = xb.shape[0]
    dtype = xb.dtype
    bt, b_pad, vmem_limit = _tile_config(B)

    x = xb.reshape(B, 28, 28)
    if b_pad != B:
        x = jnp.pad(x, ((0, b_pad - B), (0, 0), (0, 0)))
    # (H, batch, W) layout keeps all conv H-taps on the cheap major dim in-kernel.
    # The transpose stays on the host: an in-kernel major<->sublane transpose has no
    # guaranteed Mosaic lowering, and robustness wins over one extra HBM pass here.
    xt = jnp.transpose(x, (1, 0, 2))                              # (28, b_pad, 28)

    grid = (b_pad // bt,)
    out = pl.pallas_call(
        functools.partial(_mnist_cnn_kernel, bt=bt),
        out_shape=jax.ShapeDtypeStruct((b_pad, 10), dtype),
        grid_spec=pltpu.PrefetchScalarGridSpec(
            num_scalar_prefetch=0,
            grid=grid,
            in_specs=[
                pl.BlockSpec((28, bt, 28), lambda i: (0, i, 0)),    # images, batch-tiled
                pl.BlockSpec((3, 28, 256), lambda i: (0, 0, 0)),    # resident lowered weights
                pl.BlockSpec((3, 256, 128), lambda i: (0, 0, 0)),
                pl.BlockSpec((3, 128, 128), lambda i: (0, 0, 0)),
                pl.BlockSpec((1, 256), lambda i: (0, 0)),           # lowered biases
                pl.BlockSpec((1, 128), lambda i: (0, 0)),
                pl.BlockSpec((1, 128), lambda i: (0, 0)),
                pl.BlockSpec((128, 10), lambda i: (0, 0)),          # pooling matrix
            ],
            out_specs=pl.BlockSpec((bt, 10), lambda i: (i, 0)),
        ),
        compiler_params=pltpu.CompilerParams(
            dimension_semantics=("parallel",),
            vmem_limit_bytes=vmem_limit,
        ),
    )(xt, lowered["t1"], lowered["t2"], lowered["t3"],
      lowered["b1"], lowered["b2"], lowered["b3"], lowered["ap"])
    return out[:B]


# --------------------------- parameters & reference --------------------------


def init_params(key):
    def conv_init(k, c_out, c_in, ksize=3):
        fan_in = c_in * ksize * ksize
        bound = 1.0 / (fan_in ** 0.5)   # PyTorch default Conv2d init range
        kw, kb = jax.random.split(k)
        w = jax.random.uniform(kw, (c_out, c_in, ksize, ksize), jnp.float32, -bound, bound)
        b = jax.random.uniform(kb, (c_out,), jnp.float32, -bound, bound)
        return w, b

    k1, k2, k3 = jax.random.split(key, 3)
    w1, b1 = conv_init(k1, 16, 1)
    w2, b2 = conv_init(k2, 16, 16)
    w3, b3 = conv_init(k3, 10, 16)
    return {"w1": w1, "b1": b1, "w2": w2, "b2": b2, "w3": w3, "b3": b3}


def _reference_forward(xb, params):
    """Pure-JAX (XLA) reference matching the PyTorch module."""
    x = xb.reshape(-1, 1, 28, 28)

    def conv(x, w, b):
        y = jax.lax.conv_general_dilated(
            x, w, window_strides=(2, 2), padding=((1, 1), (1, 1)),
            dimension_numbers=("NCHW", "OIHW", "NCHW"))
        return jax.nn.relu(y + b[None, :, None, None])

    x = conv(x, params["w1"], params["b1"])
    x = conv(x, params["w2"], params["b2"])
    x = conv(x, params["w3"], params["b3"])
    return jnp.mean(x, axis=(2, 3))   # avg_pool2d(x, 4) on a 4x4 map + flatten


if __name__ == "__main__":
    key = jax.random.PRNGKey(0)
    pkey, xkey = jax.random.split(key)
    params = init_params(pkey)
    lowered = prepare_mnist_cnn(params)   # hoisted: lowered once per parameter set

    bs = 2
    xb = jax.random.normal(xkey, (bs, 784), jnp.float32)

    fwd = jax.jit(mnist_cnn_forward)
    out = jax.block_until_ready(fwd(xb, lowered))
    assert out.shape == (bs, 10), out.shape
    assert out.dtype == jnp.float32

    ref = jax.block_until_ready(_reference_forward(xb, params))
    assert bool(jnp.allclose(out, ref, atol=1e-3, rtol=1e-3)), (
        f"max abs err {jnp.max(jnp.abs(out - ref))}")

    print("KERNEL_OK")
</pallas_src>

<mosaic_0001>
module attributes {stable_mosaic.version = 11 : i64} {
  func.func @_mnist_cnn_kernel(%arg0: i32, %arg1: memref<28x8x28xf32, #tpu.memory_space<vmem>>, %arg2: memref<3x28x256xf32, #tpu.memory_space<vmem>>, %arg3: memref<3x256x128xf32, #tpu.memory_space<vmem>>, %arg4: memref<3x128x128xf32, #tpu.memory_space<vmem>>, %arg5: memref<1x256xf32, #tpu.memory_space<vmem>>, %arg6: memref<1x128xf32, #tpu.memory_space<vmem>>, %arg7: memref<1x128xf32, #tpu.memory_space<vmem>>, %arg8: memref<128x10xf32, #tpu.memory_space<vmem>>, %arg9: memref<8x10xf32, #tpu.memory_space<vmem>>) attributes {dimension_semantics = [#tpu.dimension_semantics<parallel>], iteration_bounds = array<i64: 1>, scalar_prefetch = 0 : i64, scratch_operands = 0 : i64, tpu.core_type = #tpu.core_type<tc>, window_params = [{transform_indices = @transform_0, window_bounds = array<i64: 28, 8, 28>}, {pipeline_mode = #tpu.pipeline_mode<synchronous>, transform_indices = @transform_1, window_bounds = array<i64: 3, 28, 256>}, {pipeline_mode = #tpu.pipeline_mode<synchronous>, transform_indices = @transform_2, window_bounds = array<i64: 3, 256, 128>}, {pipeline_mode = #tpu.pipeline_mode<synchronous>, transform_indices = @transform_3, window_bounds = array<i64: 3, 128, 128>}, {pipeline_mode = #tpu.pipeline_mode<synchronous>, transform_indices = @transform_4, window_bounds = array<i64: 1, 256>}, {pipeline_mode = #tpu.pipeline_mode<synchronous>, transform_indices = @transform_5, window_bounds = array<i64: 1, 128>}, {pipeline_mode = #tpu.pipeline_mode<synchronous>, transform_indices = @transform_6, window_bounds = array<i64: 1, 128>}, {pipeline_mode = #tpu.pipeline_mode<synchronous>, transform_indices = @transform_7, window_bounds = array<i64: 128, 10>}, {transform_indices = @transform_8, window_bounds = array<i64: 8, 10>}]} {
    %c0 = arith.constant 0 : index
    %c0_0 = arith.constant 0 : index
    %c0_1 = arith.constant 0 : index
    %0 = vector.load %arg1[%c0, %c0_0, %c0_1] : memref<28x8x28xf32, #tpu.memory_space<vmem>>, vector<28x8x28xf32>
    %1 = vector.shape_cast %0 : vector<28x8x28xf32> to vector<14x2x8x28xf32>
    %2 = vector.extract_strided_slice %1 {offsets = [0, 0, 0, 0], sizes = [14, 1, 8, 28], strides = [1, 1, 1, 1]} : vector<14x2x8x28xf32> to vector<14x1x8x28xf32>
    %3 = vector.shape_cast %2 : vector<14x1x8x28xf32> to vector<14x8x28xf32>
    %4 = vector.extract_strided_slice %1 {offsets = [0, 1, 0, 0], sizes = [14, 1, 8, 28], strides = [1, 1, 1, 1]} : vector<14x2x8x28xf32> to vector<14x1x8x28xf32>
    %5 = vector.shape_cast %4 : vector<14x1x8x28xf32> to vector<14x8x28xf32>
    %6 = vector.shape_cast %3 : vector<14x8x28xf32> to vector<112x28xf32>
    %c1 = arith.constant 1 : index
    %c0_2 = arith.constant 0 : index
    %c0_3 = arith.constant 0 : index
    %7 = vector.load %arg2[%c1, %c0_2, %c0_3] : memref<3x28x256xf32, #tpu.memory_space<vmem>>, vector<1x28x256xf32>
    %8 = vector.shape_cast %7 : vector<1x28x256xf32> to vector<28x256xf32>
    %cst = arith.constant dense<0.000000e+00> : vector<112x256xf32>
    %9 = tpu.matmul %6, %8, %cst {dimension_numbers = #tpu.dot_dimension_numbers<[1], [0], [0], [1], [0, 0, 1, 1], [], []>} : vector<112x28xf32>, vector<28x256xf32>, vector<112x256xf32> -> vector<112x256xf32>
    %10 = vector.shape_cast %5 : vector<14x8x28xf32> to vector<112x28xf32>
    %c2 = arith.constant 2 : index
    %c0_4 = arith.constant 0 : index
    %c0_5 = arith.constant 0 : index
    %11 = vector.load %arg2[%c2, %c0_4, %c0_5] : memref<3x28x256xf32, #tpu.memory_space<vmem>>, vector<1x28x256xf32>
    %12 = vector.shape_cast %11 : vector<1x28x256xf32> to vector<28x256xf32>
    %cst_6 = arith.constant dense<0.000000e+00> : vector<112x256xf32>
    %13 = tpu.matmul %10, %12, %cst_6 {dimension_numbers = #tpu.dot_dimension_numbers<[1], [0], [0], [1], [0, 0, 1, 1], [], []>} : vector<112x28xf32>, vector<28x256xf32>, vector<112x256xf32> -> vector<112x256xf32>
    %14 = arith.addf %9, %13 : vector<112x256xf32>
    %cst_7 = arith.constant 0.000000e+00 : f32
    %15 = vector.broadcast %cst_7 : f32 to vector<1x8x28xf32>
    %16 = vector.extract_strided_slice %5 {offsets = [0, 0, 0], sizes = [13, 8, 28], strides = [1, 1, 1]} : vector<14x8x28xf32> to vector<13x8x28xf32>
    %17 = tpu.concatenate %15, %16 in 0 : vector<1x8x28xf32>, vector<13x8x28xf32> -> vector<14x8x28xf32>
    %18 = vector.shape_cast %17 : vector<14x8x28xf32> to vector<112x28xf32>
    %c0_8 = arith.constant 0 : index
    %c0_9 = arith.constant 0 : index
    %c0_10 = arith.constant 0 : index
    %19 = vector.load %arg2[%c0_8, %c0_9, %c0_10] : memref<3x28x256xf32, #tpu.memory_space<vmem>>, vector<1x28x256xf32>
    %20 = vector.shape_cast %19 : vector<1x28x256xf32> to vector<28x256xf32>
    %cst_11 = arith.constant dense<0.000000e+00> : vector<112x256xf32>
    %21 = tpu.matmul %18, %20, %cst_11 {dimension_numbers = #tpu.dot_dimension_numbers<[1], [0], [0], [1], [0, 0, 1, 1], [], []>} : vector<112x28xf32>, vector<28x256xf32>, vector<112x256xf32> -> vector<112x256xf32>
    %22 = arith.addf %14, %21 : vector<112x256xf32>
    %c0_12 = arith.constant 0 : index
    %c0_13 = arith.constant 0 : index
    %23 = vector.load %arg5[%c0_12, %c0_13] : memref<1x256xf32, #tpu.memory_space<vmem>>, vector<1x256xf32>
    %24 = vector.broadcast %23 : vector<1x256xf32> to vector<112x256xf32>
    %25 = arith.addf %22, %24 : vector<112x256xf32>
    %cst_14 = arith.constant 0.000000e+00 : f32
    %26 = vector.broadcast %cst_14 : f32 to vector<112x256xf32>
    %27 = arith.maximumf %25, %26 : vector<112x256xf32>
    %28 = vector.shape_cast %27 : vector<112x256xf32> to vector<14x8x256xf32>
    %29 = vector.shape_cast %28 : vector<14x8x256xf32> to vector<7x2x8x256xf32>
    %30 = vector.extract_strided_slice %29 {offsets = [0, 0, 0, 0], sizes = [7, 1, 8, 256], strides = [1, 1, 1, 1]} : vector<7x2x8x256xf32> to vector<7x1x8x256xf32>
    %31 = vector.shape_cast %30 : vector<7x1x8x256xf32> to vector<7x8x256xf32>
    %32 = vector.extract_strided_slice %29 {offsets = [0, 1, 0, 0], sizes = [7, 1, 8, 256], strides = [1, 1, 1, 1]} : vector<7x2x8x256xf32> to vector<7x1x8x256xf32>
    %33 = vector.shape_cast %32 : vector<7x1x8x256xf32> to vector<7x8x256xf32>
    %34 = vector.shape_cast %31 : vector<7x8x256xf32> to vector<56x256xf32>
    %c1_15 = arith.constant 1 : index
    %c0_16 = arith.constant 0 : index
    %c0_17 = arith.constant 0 : index
    %35 = vector.load %arg3[%c1_15, %c0_16, %c0_17] : memref<3x256x128xf32, #tpu.memory_space<vmem>>, vector<1x256x128xf32>
    %36 = vector.shape_cast %35 : vector<1x256x128xf32> to vector<256x128xf32>
    %cst_18 = arith.constant dense<0.000000e+00> : vector<56x128xf32>
    %37 = tpu.matmul %34, %36, %cst_18 {dimension_numbers = #tpu.dot_dimension_numbers<[1], [0], [0], [1], [0, 0, 1, 1], [], []>} : vector<56x256xf32>, vector<256x128xf32>, vector<56x128xf32> -> vector<56x128xf32>
    %38 = vector.shape_cast %33 : vector<7x8x256xf32> to vector<56x256xf32>
    %c2_19 = arith.constant 2 : index
    %c0_20 = arith.constant 0 : index
    %c0_21 = arith.constant 0 : index
    %39 = vector.load %arg3[%c2_19, %c0_20, %c0_21] : memref<3x256x128xf32, #tpu.memory_space<vmem>>, vector<1x256x128xf32>
    %40 = vector.shape_cast %39 : vector<1x256x128xf32> to vector<256x128xf32>
    %cst_22 = arith.constant dense<0.000000e+00> : vector<56x128xf32>
    %41 = tpu.matmul %38, %40, %cst_22 {dimension_numbers = #tpu.dot_dimension_numbers<[1], [0], [0], [1], [0, 0, 1, 1], [], []>} : vector<56x256xf32>, vector<256x128xf32>, vector<56x128xf32> -> vector<56x128xf32>
    %42 = arith.addf %37, %41 : vector<56x128xf32>
    %cst_23 = arith.constant 0.000000e+00 : f32
    %43 = vector.broadcast %cst_23 : f32 to vector<1x8x256xf32>
    %44 = vector.extract_strided_slice %33 {offsets = [0, 0, 0], sizes = [6, 8, 256], strides = [1, 1, 1]} : vector<7x8x256xf32> to vector<6x8x256xf32>
    %45 = tpu.concatenate %43, %44 in 0 : vector<1x8x256xf32>, vector<6x8x256xf32> -> vector<7x8x256xf32>
    %46 = vector.shape_cast %45 : vector<7x8x256xf32> to vector<56x256xf32>
    %c0_24 = arith.constant 0 : index
    %c0_25 = arith.constant 0 : index
    %c0_26 = arith.constant 0 : index
    %47 = vector.load %arg3[%c0_24, %c0_25, %c0_26] : memref<3x256x128xf32, #tpu.memory_space<vmem>>, vector<1x256x128xf32>
    %48 = vector.shape_cast %47 : vector<1x256x128xf32> to vector<256x128xf32>
    %cst_27 = arith.constant dense<0.000000e+00> : vector<56x128xf32>
    %49 = tpu.matmul %46, %48, %cst_27 {dimension_numbers = #tpu.dot_dimension_numbers<[1], [0], [0], [1], [0, 0, 1, 1], [], []>} : vector<56x256xf32>, vector<256x128xf32>, vector<56x128xf32> -> vector<56x128xf32>
    %50 = arith.addf %42, %49 : vector<56x128xf32>
    %c0_28 = arith.constant 0 : index
    %c0_29 = arith.constant 0 : index
    %51 = vector.load %arg6[%c0_28, %c0_29] : memref<1x128xf32, #tpu.memory_space<vmem>>, vector<1x128xf32>
    %52 = vector.broadcast %51 : vector<1x128xf32> to vector<56x128xf32>
    %53 = arith.addf %50, %52 : vector<56x128xf32>
    %cst_30 = arith.constant 0.000000e+00 : f32
    %54 = vector.broadcast %cst_30 : f32 to vector<56x128xf32>
    %55 = arith.maximumf %53, %54 : vector<56x128xf32>
    %56 = vector.shape_cast %55 : vector<56x128xf32> to vector<7x8x128xf32>
    %cst_31 = arith.constant 0.000000e+00 : f32
    %57 = vector.broadcast %cst_31 : f32 to vector<1x8x128xf32>
    %58 = tpu.concatenate %56, %57 in 0 : vector<7x8x128xf32>, vector<1x8x128xf32> -> vector<8x8x128xf32>
    %59 = vector.shape_cast %58 : vector<8x8x128xf32> to vector<4x2x8x128xf32>
    %60 = vector.extract_strided_slice %59 {offsets = [0, 0, 0, 0], sizes = [4, 1, 8, 128], strides = [1, 1, 1, 1]} : vector<4x2x8x128xf32> to vector<4x1x8x128xf32>
    %61 = vector.shape_cast %60 : vector<4x1x8x128xf32> to vector<4x8x128xf32>
    %62 = vector.extract_strided_slice %59 {offsets = [0, 1, 0, 0], sizes = [4, 1, 8, 128], strides = [1, 1, 1, 1]} : vector<4x2x8x128xf32> to vector<4x1x8x128xf32>
    %63 = vector.shape_cast %62 : vector<4x1x8x128xf32> to vector<4x8x128xf32>
    %64 = vector.shape_cast %61 : vector<4x8x128xf32> to vector<32x128xf32>
    %c1_32 = arith.constant 1 : index
    %c0_33 = arith.constant 0 : index
    %c0_34 = arith.constant 0 : index
    %65 = vector.load %arg4[%c1_32, %c0_33, %c0_34] : memref<3x128x128xf32, #tpu.memory_space<vmem>>, vector<1x128x128xf32>
    %66 = vector.shape_cast %65 : vector<1x128x128xf32> to vector<128x128xf32>
    %cst_35 = arith.constant dense<0.000000e+00> : vector<32x128xf32>
    %67 = tpu.matmul %64, %66, %cst_35 {dimension_numbers = #tpu.dot_dimension_numbers<[1], [0], [0], [1], [0, 0, 1, 1], [], []>} : vector<32x128xf32>, vector<128x128xf32>, vector<32x128xf32> -> vector<32x128xf32>
    %68 = vector.shape_cast %63 : vector<4x8x128xf32> to vector<32x128xf32>
    %c2_36 = arith.constant 2 : index
    %c0_37 = arith.constant 0 : index
    %c0_38 = arith.constant 0 : index
    %69 = vector.load %arg4[%c2_36, %c0_37, %c0_38] : memref<3x128x128xf32, #tpu.memory_space<vmem>>, vector<1x128x128xf32>
    %70 = vector.shape_cast %69 : vector<1x128x128xf32> to vector<128x128xf32>
    %cst_39 = arith.constant dense<0.000000e+00> : vector<32x128xf32>
    %71 = tpu.matmul %68, %70, %cst_39 {dimension_numbers = #tpu.dot_dimension_numbers<[1], [0], [0], [1], [0, 0, 1, 1], [], []>} : vector<32x128xf32>, vector<128x128xf32>, vector<32x128xf32> -> vector<32x128xf32>
    %72 = arith.addf %67, %71 : vector<32x128xf32>
    %cst_40 = arith.constant 0.000000e+00 : f32
    %73 = vector.broadcast %cst_40 : f32 to vector<1x8x128xf32>
    %74 = vector.extract_strided_slice %63 {offsets = [0, 0, 0], sizes = [3, 8, 128], strides = [1, 1, 1]} : vector<4x8x128xf32> to vector<3x8x128xf32>
    %75 = tpu.concatenate %73, %74 in 0 : vector<1x8x128xf32>, vector<3x8x128xf32> -> vector<4x8x128xf32>
    %76 = vector.shape_cast %75 : vector<4x8x128xf32> to vector<32x128xf32>
    %c0_41 = arith.constant 0 : index
    %c0_42 = arith.constant 0 : index
    %c0_43 = arith.constant 0 : index
    %77 = vector.load %arg4[%c0_41, %c0_42, %c0_43] : memref<3x128x128xf32, #tpu.memory_space<vmem>>, vector<1x128x128xf32>
    %78 = vector.shape_cast %77 : vector<1x128x128xf32> to vector<128x128xf32>
    %cst_44 = arith.constant dense<0.000000e+00> : vector<32x128xf32>
    %79 = tpu.matmul %76, %78, %cst_44 {dimension_numbers = #tpu.dot_dimension_numbers<[1], [0], [0], [1], [0, 0, 1, 1], [], []>} : vector<32x128xf32>, vector<128x128xf32>, vector<32x128xf32> -> vector<32x128xf32>
    %80 = arith.addf %72, %79 : vector<32x128xf32>
    %c0_45 = arith.constant 0 : index
    %c0_46 = arith.constant 0 : index
    %81 = vector.load %arg7[%c0_45, %c0_46] : memref<1x128xf32, #tpu.memory_space<vmem>>, vector<1x128xf32>
    %82 = vector.broadcast %81 : vector<1x128xf32> to vector<32x128xf32>
    %83 = arith.addf %80, %82 : vector<32x128xf32>
    %cst_47 = arith.constant 0.000000e+00 : f32
    %84 = vector.broadcast %cst_47 : f32 to vector<32x128xf32>
    %85 = arith.maximumf %83, %84 : vector<32x128xf32>
    %86 = vector.shape_cast %85 : vector<32x128xf32> to vector<4x8x128xf32>
    %cst_48 = arith.constant dense<0.000000e+00> : vector<8x128xf32>
    %87 = vector.multi_reduction <add>, %86, %cst_48 [0] : vector<4x8x128xf32> to vector<8x128xf32>
    %c0_49 = arith.constant 0 : index
    %c0_50 = arith.constant 0 : index
    %88 = vector.load %arg8[%c0_49, %c0_50] : memref<128x10xf32, #tpu.memory_space<vmem>>, vector<128x10xf32>
    %cst_51 = arith.constant dense<0.000000e+00> : vector<8x10xf32>
    %89 = tpu.matmul %87, %88, %cst_51 {dimension_numbers = #tpu.dot_dimension_numbers<[1], [0], [0], [1], [0, 0, 1, 1], [], []>} : vector<8x128xf32>, vector<128x10xf32>, vector<8x10xf32> -> vector<8x10xf32>
    %c0_52 = arith.constant 0 : index
    %c0_53 = arith.constant 0 : index
    %90 = vector.load %arg9[%c0_52, %c0_53] : memref<8x10xf32, #tpu.memory_space<vmem>>, vector<8x10xf32>
    tpu.vector_store %arg9[%c0_52, %c0_53], %89 {strides = array<i32>} : memref<8x10xf32, #tpu.memory_space<vmem>>, vector<8x10xf32>,
    return
  }
  func.func @transform_0(%arg0: i32) -> (i32, i32, i32) {
    %c0_i32 = arith.constant 0 : i32
    %c0_i32_0 = arith.constant 0 : i32
    %c0_i32_1 = arith.constant 0 : i32
    return %c0_i32, %arg0, %c0_i32_0 : i32, i32, i32
  }
  func.func @transform_1(%arg0: i32) -> (i32, i32, i32) {
    %c0_i32 = arith.constant 0 : i32
    %c0_i32_0 = arith.constant 0 : i32
    %c0_i32_1 = arith.constant 0 : i32
    %c0_i32_2 = arith.constant 0 : i32
    return %c0_i32, %c0_i32_0, %c0_i32_1 : i32, i32, i32
  }
  func.func @transform_2(%arg0: i32) -> (i32, i32, i32) {
    %c0_i32 = arith.constant 0 : i32
    %c0_i32_0 = arith.constant 0 : i32
    %c0_i32_1 = arith.constant 0 : i32
    %c0_i32_2 = arith.constant 0 : i32
    return %c0_i32, %c0_i32_0, %c0_i32_1 : i32, i32, i32
  }
  func.func @transform_3(%arg0: i32) -> (i32, i32, i32) {
    %c0_i32 = arith.constant 0 : i32
    %c0_i32_0 = arith.constant 0 : i32
    %c0_i32_1 = arith.constant 0 : i32
    %c0_i32_2 = arith.constant 0 : i32
    return %c0_i32, %c0_i32_0, %c0_i32_1 : i32, i32, i32
  }
  func.func @transform_4(%arg0: i32) -> (i32, i32) {
    %c0_i32 = arith.constant 0 : i32
    %c0_i32_0 = arith.constant 0 : i32
    %c0_i32_1 = arith.constant 0 : i32
    return %c0_i32, %c0_i32_0 : i32, i32
  }
  func.func @transform_5(%arg0: i32) -> (i32, i32) {
    %c0_i32 = arith.constant 0 : i32
    %c0_i32_0 = arith.constant 0 : i32
    %c0_i32_1 = arith.constant 0 : i32
    return %c0_i32, %c0_i32_0 : i32, i32
  }
  func.func @transform_6(%arg0: i32) -> (i32, i32) {
    %c0_i32 = arith.constant 0 : i32
    %c0_i32_0 = arith.constant 0 : i32
    %c0_i32_1 = arith.constant 0 : i32
    return %c0_i32, %c0_i32_0 : i32, i32
  }
  func.func @transform_7(%arg0: i32) -> (i32, i32) {
    %c0_i32 = arith.constant 0 : i32
    %c0_i32_0 = arith.constant 0 : i32
    %c0_i32_1 = arith.constant 0 : i32
    return %c0_i32, %c0_i32_0 : i32, i32
  }
  func.func @transform_8(%arg0: i32) -> (i32, i32) {
    %c0_i32 = arith.constant 0 : i32
    %c0_i32_0 = arith.constant 0 : i32
    return %arg0, %c0_i32 : i32, i32
  }
}

</mosaic_0001>

<llo_original>
// kernel: mnist_cnn_forward.1
$region0: #{mnist_cnn_forward.1}
  #allocation0 [shape = 'u32[]', space=smem, size = 0x4, offset = 0x4, fixed_abs, tag = 'smem constant byte address 0x4 - core index']
  #allocation1 [shape = 'u32[144,128]{1,0:T(1,128)}', space=vmem, size = 0x12000, scoped, tag = 'internal scratch']
  %s0 = inlined_call_operand.vmem [shape: f32[28,8,28], index: 0, kind: input, shape index: {}]
  %s1 = inlined_call_operand.vmem [shape: f32[3,28,256], index: 1, kind: input, shape index: {}]
  %s2 = inlined_call_operand.hbm [shape: f32[3,256,128], index: 2, kind: input, shape index: {}]
  %s3 = inlined_call_operand.vmem [shape: f32[3,128,128], index: 3, kind: input, shape index: {}]
  %s4 = inlined_call_operand.vmem [shape: f32[1,256], index: 4, kind: input, shape index: {}]
  %s5 = inlined_call_operand.vmem [shape: f32[1,128], index: 5, kind: input, shape index: {}]
  %s6 = inlined_call_operand.vmem [shape: f32[1,128], index: 6, kind: input, shape index: {}]
  %s7 = inlined_call_operand.vmem [shape: f32[128,10], index: 7, kind: input, shape index: {}]
  %s8 = inlined_call_operand.vmem [shape: f32[8,10], index: 8, kind: output, shape index: {}]
  %s9 = sld [smem:[#allocation0]]
  $region46: #{mnist_cnn_forward.1} parent=0
    _
  %s11 = ssub.s32 1, %s9
  %s12 = scalar_select 0, %s11, %s9
  $region1: #{mnist_cnn_forward.1} parent=0
    #allocation2 [shape = 'u8[393216]{0}', space=vmem, size = 0x60000, scoped, tag = 'input window, operand 2, single buffered']
    #allocation3 [shape = 's32[1]{0}', space=sflag, size = 0x4, scoped, tag = 'scoped memory for mnist_cnn_forward.1']
    %13 = vsyncpa [#allocation3], 0
    // Predicated region
    $region2: #{mnist_cnn_forward.1} parent=1 // pred_check
      _
    $region3: #{mnist_cnn_forward.1} parent=1 // pred_check_branch
      %15 = sbr.rel (0) target = $region5
    $region4: #{mnist_cnn_forward.1} parent=1 // pred_region
      _
    $region5: #{mnist_cnn_forward.1} parent=1 // pred_fallthru
      _
    // Predicated region
    $region6: #{mnist_cnn_forward.1} parent=1 // pred_check
      _
    $region7: #{mnist_cnn_forward.1} parent=1 // pred_check_branch
      %17 = sbr.rel (0) target = $region9
    $region8: #{mnist_cnn_forward.1} parent=1 // pred_region
      _
    $region9: #{mnist_cnn_forward.1} parent=1 // pred_fallthru
      _
    // Predicated region
    $region10: #{mnist_cnn_forward.1} parent=1 // pred_check
      _
    $region11: #{mnist_cnn_forward.1} parent=1 // pred_check_branch
      %19 = sbr.rel (0) target = $region13
    $region12: #{mnist_cnn_forward.1} parent=1 // pred_region
      %s21 = ssub.s32 12288, 12288
      %22 = vsyncadd [#allocation3], %s21
      %s23 = sshll.u32 [#allocation2], 4
      %s24 = int_to_ptr.vmem [resolvable:$true] %s23
      %29 = dma.hbm_to_vmem [thread:$0]  %s2, 12288, %s24, [#allocation3], 128, 128, 8
    $region13: #{mnist_cnn_forward.1} parent=1 // pred_fallthru
      _
    // Predicated region
    $region14: #{mnist_cnn_forward.1} parent=1 // pred_check
      _
    $region15: #{mnist_cnn_forward.1} parent=1 // pred_check_branch
      %31 = sbr.rel (0) target = $region17
    $region16: #{mnist_cnn_forward.1} parent=1 // pred_region
      _
    $region17: #{mnist_cnn_forward.1} parent=1 // pred_fallthru
      _
    // Predicated region
    $region18: #{mnist_cnn_forward.1} parent=1 // pred_check
      _
    $region19: #{mnist_cnn_forward.1} parent=1 // pred_check_branch
      %33 = sbr.rel (0) target = $region21
    $region20: #{mnist_cnn_forward.1} parent=1 // pred_region
      _
    $region21: #{mnist_cnn_forward.1} parent=1 // pred_fallthru
      _
    // Predicated region
    $region22: #{mnist_cnn_forward.1} parent=1 // pred_check
      _
    $region23: #{mnist_cnn_forward.1} parent=1 // pred_check_branch
      %35 = sbr.rel (0) target = $region25
    $region24: #{mnist_cnn_forward.1} parent=1 // pred_region
      _
    $region25: #{mnist_cnn_forward.1} parent=1 // pred_fallthru
      _
    // Predicated region
    $region26: #{mnist_cnn_forward.1} parent=1 // pred_check
      _
    $region27: #{mnist_cnn_forward.1} parent=1 // pred_check_branch
      %37 = sbr.rel (0) target = $region29
    $region28: #{mnist_cnn_forward.1} parent=1 // pred_region
      _
    $region29: #{mnist_cnn_forward.1} parent=1 // pred_fallthru
      _
    // Predicated region
    $region30: #{mnist_cnn_forward.1} parent=1 // pred_check
      _
    $region31: #{mnist_cnn_forward.1} parent=1 // pred_check_branch
      %39 = sbr.rel (0) target = $region33
    $region32: #{mnist_cnn_forward.1} parent=1 // pred_region
      _
    $region33: #{mnist_cnn_forward.1} parent=1 // pred_fallthru
      _
    // Predicated region
    $region34: #{mnist_cnn_forward.1} parent=1 // pred_check
      _
    $region35: #{mnist_cnn_forward.1} parent=1 // pred_check_branch
      %41 = sbr.rel (0) target = $region37
    $region36: #{mnist_cnn_forward.1} parent=1 // pred_region
      %42 = dma.done [#allocation3], 12288
    $region37: #{mnist_cnn_forward.1} parent=1 // pred_fallthru
      _
    %v43 = vld [vmem:[%s0] sm:$0xff]
    %v44 = vld [vmem:[%s0 + $0x8] sm:$0xff]
    %v45 = vld [vmem:[%s0 + $0x10] sm:$0xff]
    %v46 = vld [vmem:[%s0 + $0x18] sm:$0xff]
    %v47 = vld [vmem:[%s0 + $0x20] sm:$0xff]
    %v48 = vld [vmem:[%s0 + $0x28] sm:$0xff]
    %v49 = vld [vmem:[%s0 + $0x30] sm:$0xff]
    %v50 = vld [vmem:[%s0 + $0x38] sm:$0xff]
    %v51 = vld [vmem:[%s0 + $0x40] sm:$0xff]
    %v52 = vld [vmem:[%s0 + $0x48] sm:$0xff]
    %v53 = vld [vmem:[%s0 + $0x50] sm:$0xff]
    %v54 = vld [vmem:[%s0 + $0x58] sm:$0xff]
    %v55 = vld [vmem:[%s0 + $0x60] sm:$0xff]
    %v56 = vld [vmem:[%s0 + $0x68] sm:$0xff]
    %v57 = vld [vmem:[%s0 + $0x70] sm:$0xff]
    %v58 = vld [vmem:[%s0 + $0x78] sm:$0xff]
    %v59 = vld [vmem:[%s0 + $0x80] sm:$0xff]
    %v60 = vld [vmem:[%s0 + $0x88] sm:$0xff]
    %v61 = vld [vmem:[%s0 + $0x90] sm:$0xff]
    %v62 = vld [vmem:[%s0 + $0x98] sm:$0xff]
    %v63 = vld [vmem:[%s0 + $0xa0] sm:$0xff]
    %v64 = vld [vmem:[%s0 + $0xa8] sm:$0xff]
    %v65 = vld [vmem:[%s0 + $0xb0] sm:$0xff]
    %v66 = vld [vmem:[%s0 + $0xb8] sm:$0xff]
    %v67 = vld [vmem:[%s0 + $0xc0] sm:$0xff]
    %v68 = vld [vmem:[%s0 + $0xc8] sm:$0xff]
    %v69 = vld [vmem:[%s0 + $0xd0] sm:$0xff]
    %v70 = vld [vmem:[%s0 + $0xd8] sm:$0xff]
    %s71 = scalar_lea.vmem %s1, 64
    %v72 = vld [vmem:[%s71] sm:$0xff]
    %v73 = vld [vmem:[%s71 + $0x8] sm:$0xff]
    %v74 = vld [vmem:[%s71 + $0x10] sm:$0xff]
    %v75 = vld [vmem:[%s71 + $0x18] sm:$0xff]
    %v76 = vld [vmem:[%s71 + $0x20] sm:$0xff]
    %v77 = vld [vmem:[%s71 + $0x28] sm:$0xff]
    %v78 = vld [vmem:[%s71 + $0x30] sm:$0xf]
    %v79 = vld [vmem:[%s71 + $0x38] sm:$0xf]
    %s80 = scalar_lea.vmem %s1, 128
    %v81 = vld [vmem:[%s80] sm:$0xff]
    %v82 = vld [vmem:[%s80 + $0x8] sm:$0xff]
    %v83 = vld [vmem:[%s80 + $0x10] sm:$0xff]
    %v84 = vld [vmem:[%s80 + $0x18] sm:$0xff]
    %v85 = vld [vmem:[%s80 + $0x20] sm:$0xff]
    %v86 = vld [vmem:[%s80 + $0x28] sm:$0xff]
    %v87 = vld [vmem:[%s80 + $0x30] sm:$0xf]
    %v88 = vld [vmem:[%s80 + $0x38] sm:$0xf]
    %vm89 = vcmask 228352
    %v91 = vsel %vm89, %v44, 0
    %v94 = vsel %vm89, %v46, 0
    %v97 = vsel %vm89, %v48, 0
    %v100 = vsel %vm89, %v50, 0
    %v103 = vsel %vm89, %v52, 0
    %v106 = vsel %vm89, %v54, 0
    %v109 = vsel %vm89, %v56, 0
    %v112 = vsel %vm89, %v58, 0
    %v115 = vsel %vm89, %v60, 0
    %v118 = vsel %vm89, %v62, 0
    %v121 = vsel %vm89, %v64, 0
    %v124 = vsel %vm89, %v66, 0
    %v127 = vsel %vm89, %v68, 0
    %v130 = vsel %vm89, %v70, 0
    %vm132 = vcmask 1043456
    %v134 = vsel %vm132, %v87, 0
    %v137 = vsel %vm132, %v88, 0
    %139 = vmatprep.subr.mxu0 %v82
    %140 = vmatpush1.msra.mxu0 %v81
    %141 = vmatprep.subr.mxu0 %v84
    %142 = vmatpush1.msra.mxu0 %v83
    %143 = vmatprep.subr.mxu0 %v86
    %144 = vmatpush1.msra.mxu0 %v85
    %145 = vmatprep.subr.mxu0 %v137
    %146 = vmatpush1.msra.mxu0 %v134
    %147 = vmatprep.subr.mxu0 0.0
    %148 = vmatpush1.msra.mxu0 0.0
    %149 = vmatprep.subr.mxu0 0.0
    %150 = vmatpush1.msra.mxu0 0.0
    %151 = vmatprep.subr.mxu0 0.0
    %152 = vmatpush1.msra.mxu0 0.0
    %153 = vmatprep.subr.mxu0 0.0
    %154 = vmatpush1.msra.mxu0 0.0
    %155 = vmatprep.subr.mxu0 0.0
    %156 = vmatpush1.msra.mxu0 0.0
    %157 = vmatprep.subr.mxu0 0.0
    %158 = vmatpush1.msra.mxu0 0.0
    %159 = vmatprep.subr.mxu0 0.0
    %160 = vmatpush1.msra.mxu0 0.0
    %161 = vmatprep.subr.mxu0 0.0
    %162 = vmatpush1.msra.mxu0 0.0
    %163 = vmatprep.subr.mxu0 0.0
    %164 = vmatpush1.msra.mxu0 0.0
    %165 = vmatprep.subr.mxu0 0.0
    %166 = vmatpush1.msra.mxu0 0.0
    %167 = vmatprep.subr.mxu0 0.0
    %168 = vmatpush1.msra.mxu0 0.0
    %169 = vmatprep.subr.mxu0 0.0
    %170 = vmatpush1.msra.mxu0 0.0
    %171 = vmatprep.subr.mxu0 0.0
    %172 = vmatpush1.msra.mxu0 0.0
    %173 = vmatprep.subr.mxu0 0.0
    %174 = vmatpush1.msra.mxu0 0.0
    %175 = vmatprep.subr.mxu0 0.0
    %176 = vmatpush1.msra.mxu0 0.0
    %177 = vmatprep.subr.mxu0 0.0
    %178 = vmatpush1.msra.mxu0 0.0
    %179 = vmatprep.subr.mxu0 0.0
    %180 = vmatpush1.msra.mxu0 0.0
    %181 = vmatprep.subr.mxu0 0.0
    %182 = vmatpush1.msra.mxu0 0.0
    %183 = vmatprep.subr.mxu0 0.0
    %184 = vmatpush1.msra.mxu0 0.0
    %185 = vmatprep.subr.mxu0 0.0
    %186 = vmatpush1.msra.mxu0 0.0
    %187 = vmatprep.subr.mxu0 0.0
    %188 = vmatpush1.msra.mxu0 0.0
    %189 = vmatprep.subr.mxu0 0.0
    %190 = vmatpush1.msra.mxu0 0.0
    %191 = vmatprep.subr.mxu0 0.0
    %192 = vmatpush1.msra.mxu0 0.0
    %193 = vmatprep.subr.mxu0 0.0
    %194 = vmatpush1.msra.mxu0 0.0
    %195 = vmatprep.subr.mxu0 0.0
    %196 = vmatpush1.msra.mxu0 0.0
    %197 = vmatprep.subr.mxu0 0.0
    %198 = vmatpush1.msra.mxu0 0.0
    %199 = vmatprep.subr.mxu0 0.0
    %200 = vmatpush1.msra.mxu0 0.0
    %201 = vmatprep.subr.mxu0 0.0
    %202 = vmatpush1.msra.mxu0 0.0
    %203 = vmatprep.mubr.f32.mxu0 0.0
    %204 = vmatmul.mubr.f32.gmra.mrb[0].mxu0 %v91
    %v205 = vpop.f32.mrb[0].mxu0
    %v206 = vadd.f32 0.0, %v205
    %v207 = vpop.f32.mrb[0].mxu0
    %v208 = vadd.f32 0.0, %v207
    %209 = vmatprep.mubr.f32.mxu0 0.0
    %210 = vmatmul.mubr.f32.gmra.mrb[0].mxu0 %v94
    %v211 = vpop.f32.mrb[0].mxu0
    %v212 = vadd.f32 0.0, %v211
    %v213 = vpop.f32.mrb[0].mxu0
    %v214 = vadd.f32 0.0, %v213
    %215 = vmatprep.mubr.f32.mxu0 0.0
    %216 = vmatmul.mubr.f32.gmra.mrb[0].mxu0 %v97
    %v217 = vpop.f32.mrb[0].mxu0
    %v218 = vadd.f32 0.0, %v217
    %v219 = vpop.f32.mrb[0].mxu0
    %v220 = vadd.f32 0.0, %v219
    %221 = vmatprep.mubr.f32.mxu0 0.0
    %222 = vmatmul.mubr.f32.gmra.mrb[0].mxu0 %v100
    %v223 = vpop.f32.mrb[0].mxu0
    %v224 = vadd.f32 0.0, %v223
    %v225 = vpop.f32.mrb[0].mxu0
    %v226 = vadd.f32 0.0, %v225
    %227 = vmatprep.mubr.f32.mxu0 0.0
    %228 = vmatmul.mubr.f32.gmra.mrb[0].mxu0 %v103
    %v229 = vpop.f32.mrb[0].mxu0
    %v230 = vadd.f32 0.0, %v229
    %v231 = vpop.f32.mrb[0].mxu0
    %v232 = vadd.f32 0.0, %v231
    %233 = vmatprep.mubr.f32.mxu0 0.0
    %234 = vmatmul.mubr.f32.gmra.mrb[0].mxu0 %v106
    %v235 = vpop.f32.mrb[0].mxu0
    %v236 = vadd.f32 0.0, %v235
    %v237 = vpop.f32.mrb[0].mxu0
    %v238 = vadd.f32 0.0, %v237
    %239 = vmatprep.mubr.f32.mxu0 0.0
    %240 = vmatmul.mubr.f32.gmra.mrb[0].mxu0 %v109
    %v241 = vpop.f32.mrb[0].mxu0
    %v242 = vadd.f32 0.0, %v241
    %v243 = vpop.f32.mrb[0].mxu0
    %v244 = vadd.f32 0.0, %v243
    %245 = vmatprep.mubr.f32.mxu0 0.0
    %246 = vmatmul.mubr.f32.gmra.mrb[0].mxu0 %v112
    %v247 = vpop.f32.mrb[0].mxu0
    %v248 = vadd.f32 0.0, %v247
    %v249 = vpop.f32.mrb[0].mxu0
    %v250 = vadd.f32 0.0, %v249
    %251 = vmatprep.mubr.f32.mxu0 0.0
    %252 = vmatmul.mubr.f32.gmra.mrb[0].mxu0 %v115
    %v253 = vpop.f32.mrb[0].mxu0
    %v254 = vadd.f32 0.0, %v253
    %v255 = vpop.f32.mrb[0].mxu0
    %v256 = vadd.f32 0.0, %v255
    %257 = vmatprep.mubr.f32.mxu0 0.0
    %258 = vmatmul.mubr.f32.gmra.mrb[0].mxu0 %v118
    %v259 = vpop.f32.mrb[0].mxu0
    %v260 = vadd.f32 0.0, %v259
    %v261 = vpop.f32.mrb[0].mxu0
    %v262 = vadd.f32 0.0, %v261
    %263 = vmatprep.mubr.f32.mxu0 0.0
    %264 = vmatmul.mubr.f32.gmra.mrb[0].mxu0 %v121
    %v265 = vpop.f32.mrb[0].mxu0
    %v266 = vadd.f32 0.0, %v265
    %v267 = vpop.f32.mrb[0].mxu0
    %v268 = vadd.f32 0.0, %v267
    %269 = vmatprep.mubr.f32.mxu0 0.0
    %270 = vmatmul.mubr.f32.gmra.mrb[0].mxu0 %v124
    %v271 = vpop.f32.mrb[0].mxu0
    %v272 = vadd.f32 0.0, %v271
    %v273 = vpop.f32.mrb[0].mxu0
    %v274 = vadd.f32 0.0, %v273
    %275 = vmatprep.mubr.f32.mxu0 0.0
    %276 = vmatmul.mubr.f32.gmra.mrb[0].mxu0 %v127
    %v277 = vpop.f32.mrb[0].mxu0
    %v278 = vadd.f32 0.0, %v277
    %v279 = vpop.f32.mrb[0].mxu0
    %v280 = vadd.f32 0.0, %v279
    %281 = vmatprep.mubr.f32.mxu0 0.0
    %282 = vmatmul.mubr.f32.gmra.mrb[0].mxu0 %v130
    %v283 = vpop.f32.mrb[0].mxu0
    %v284 = vadd.f32 0.0, %v283
    %v285 = vpop.f32.mrb[0].mxu0
    %v286 = vadd.f32 0.0, %v285
    %287 = vdwg.mxu0
    %v289 = vsel %vm89, %v43, 0
    %v292 = vsel %vm89, %v45, 0
    %v295 = vsel %vm89, %v47, 0
    %v298 = vsel %vm89, %v49, 0
    %v301 = vsel %vm89, %v51, 0
    %v304 = vsel %vm89, %v53, 0
    %v307 = vsel %vm89, %v55, 0
    %v310 = vsel %vm89, %v57, 0
    %v313 = vsel %vm89, %v59, 0
    %v316 = vsel %vm89, %v61, 0
    %v319 = vsel %vm89, %v63, 0
    %v322 = vsel %vm89, %v65, 0
    %v325 = vsel %vm89, %v67, 0
    %v328 = vsel %vm89, %v69, 0
    %v331 = vsel %vm132, %v78, 0
    %v334 = vsel %vm132, %v79, 0
    %336 = vmatprep.subr.mxu0 %v73
    %337 = vmatpush1.msra.mxu0 %v72
    %338 = vmatprep.subr.mxu0 %v75
    %339 = vmatpush1.msra.mxu0 %v74
    %340 = vmatprep.subr.mxu0 %v77
    %341 = vmatpush1.msra.mxu0 %v76
    %342 = vmatprep.subr.mxu0 %v334
    %343 = vmatpush1.msra.mxu0 %v331
    %344 = vmatprep.subr.mxu0 0.0
    %345 = vmatpush1.msra.mxu0 0.0
    %346 = vmatprep.subr.mxu0 0.0
    %347 = vmatpush1.msra.mxu0 0.0
    %348 = vmatprep.subr.mxu0 0.0
    %349 = vmatpush1.msra.mxu0 0.0
    %350 = vmatprep.subr.mxu0 0.0
    %351 = vmatpush1.msra.mxu0 0.0
    %352 = vmatprep.subr.mxu0 0.0
    %353 = vmatpush1.msra.mxu0 0.0
    %354 = vmatprep.subr.mxu0 0.0
    %355 = vmatpush1.msra.mxu0 0.0
    %356 = vmatprep.subr.mxu0 0.0
    %357 = vmatpush1.msra.mxu0 0.0
    %358 = vmatprep.subr.mxu0 0.0
    %359 = vmatpush1.msra.mxu0 0.0
    %360 = vmatprep.subr.mxu0 0.0
    %361 = vmatpush1.msra.mxu0 0.0
    %362 = vmatprep.subr.mxu0 0.0
    %363 = vmatpush1.msra.mxu0 0.0
    %364 = vmatprep.subr.mxu0 0.0
    %365 = vmatpush1.msra.mxu0 0.0
    %366 = vmatprep.subr.mxu0 0.0
    %367 = vmatpush1.msra.mxu0 0.0
    %368 = vmatprep.subr.mxu0 0.0
    %369 = vmatpush1.msra.mxu0 0.0
    %370 = vmatprep.subr.mxu0 0.0
    %371 = vmatpush1.msra.mxu0 0.0
    %372 = vmatprep.subr.mxu0 0.0
    %373 = vmatpush1.msra.mxu0 0.0
    %374 = vmatprep.subr.mxu0 0.0
    %375 = vmatpush1.msra.mxu0 0.0
    %376 = vmatprep.subr.mxu0 0.0
    %377 = vmatpush1.msra.mxu0 0.0
    %378 = vmatprep.subr.mxu0 0.0
    %379 = vmatpush1.msra.mxu0 0.0
    %380 = vmatprep.subr.mxu0 0.0
    %381 = vmatpush1.msra.mxu0 0.0
    %382 = vmatprep.subr.mxu0 0.0
    %383 = vmatpush1.msra.mxu0 0.0
    %384 = vmatprep.subr.mxu0 0.0
    %385 = vmatpush1.msra.mxu0 0.0
    %386 = vmatprep.subr.mxu0 0.0
    %387 = vmatpush1.msra.mxu0 0.0
    %388 = vmatprep.subr.mxu0 0.0
    %389 = vmatpush1.msra.mxu0 0.0
    %390 = vmatprep.subr.mxu0 0.0
    %391 = vmatpush1.msra.mxu0 0.0
    %392 = vmatprep.subr.mxu0 0.0
    %393 = vmatpush1.msra.mxu0 0.0
    %394 = vmatprep.subr.mxu0 0.0
    %395 = vmatpush1.msra.mxu0 0.0
    %396 = vmatprep.subr.mxu0 0.0
    %397 = vmatpush1.msra.mxu0 0.0
    %398 = vmatprep.subr.mxu0 0.0
    %399 = vmatpush1.msra.mxu0 0.0
    %400 = vmatprep.mubr.f32.mxu0 0.0
    %401 = vmatmul.mubr.f32.gmra.mrb[0].mxu0 %v289
    %v402 = vpop.f32.mrb[0].mxu0
    %v403 = vadd.f32 %v206, %v402
    %v404 = vpop.f32.mrb[0].mxu0
    %v405 = vadd.f32 %v208, %v404
    %406 = vmatprep.mubr.f32.mxu0 0.0
    %407 = vmatmul.mubr.f32.gmra.mrb[0].mxu0 %v292
    %v408 = vpop.f32.mrb[0].mxu0
    %v409 = vadd.f32 %v212, %v408
    %v410 = vpop.f32.mrb[0].mxu0
    %v411 = vadd.f32 %v214, %v410
    %412 = vmatprep.mubr.f32.mxu0 0.0
    %413 = vmatmul.mubr.f32.gmra.mrb[0].mxu0 %v295
    %v414 = vpop.f32.mrb[0].mxu0
    %v415 = vadd.f32 %v218, %v414
    %v416 = vpop.f32.mrb[0].mxu0
    %v417 = vadd.f32 %v220, %v416
    %418 = vmatprep.mubr.f32.mxu0 0.0
    %419 = vmatmul.mubr.f32.gmra.mrb[0].mxu0 %v298
    %v420 = vpop.f32.mrb[0].mxu0
    %v421 = vadd.f32 %v224, %v420
    %v422 = vpop.f32.mrb[0].mxu0
    %v423 = vadd.f32 %v226, %v422
    %424 = vmatprep.mubr.f32.mxu0 0.0
    %425 = vmatmul.mubr.f32.gmra.mrb[0].mxu0 %v301
    %v426 = vpop.f32.mrb[0].mxu0
    %v427 = vadd.f32 %v230, %v426
    %v428 = vpop.f32.mrb[0].mxu0
    %v429 = vadd.f32 %v232, %v428
    %430 = vmatprep.mubr.f32.mxu0 0.0
    %431 = vmatmul.mubr.f32.gmra.mrb[0].mxu0 %v304
    %v432 = vpop.f32.mrb[0].mxu0
    %v433 = vadd.f32 %v236, %v432
    %v434 = vpop.f32.mrb[0].mxu0
    %v435 = vadd.f32 %v238, %v434
    %436 = vmatprep.mubr.f32.mxu0 0.0
    %437 = vmatmul.mubr.f32.gmra.mrb[0].mxu0 %v307
    %v438 = vpop.f32.mrb[0].mxu0
    %v439 = vadd.f32 %v242, %v438
    %v440 = vpop.f32.mrb[0].mxu0
    %v441 = vadd.f32 %v244, %v440
    %442 = vmatprep.mubr.f32.mxu0 0.0
    %443 = vmatmul.mubr.f32.gmra.mrb[0].mxu0 %v310
    %v444 = vpop.f32.mrb[0].mxu0
    %v445 = vadd.f32 %v248, %v444
    %v446 = vpop.f32.mrb[0].mxu0
    %v447 = vadd.f32 %v250, %v446
    %448 = vmatprep.mubr.f32.mxu0 0.0
    %449 = vmatmul.mubr.f32.gmra.mrb[0].mxu0 %v313
    %v450 = vpop.f32.mrb[0].mxu0
    %v451 = vadd.f32 %v254, %v450
    %v452 = vpop.f32.mrb[0].mxu0
    %v453 = vadd.f32 %v256, %v452
    %454 = vmatprep.mubr.f32.mxu0 0.0
    %455 = vmatmul.mubr.f32.gmra.mrb[0].mxu0 %v316
    %v456 = vpop.f32.mrb[0].mxu0
    %v457 = vadd.f32 %v260, %v456
    %v458 = vpop.f32.mrb[0].mxu0
    %v459 = vadd.f32 %v262, %v458
    %460 = vmatprep.mubr.f32.mxu0 0.0
    %461 = vmatmul.mubr.f32.gmra.mrb[0].mxu0 %v319
    %v462 = vpop.f32.mrb[0].mxu0
    %v463 = vadd.f32 %v266, %v462
    %v464 = vpop.f32.mrb[0].mxu0
    %v465 = vadd.f32 %v268, %v464
    %466 = vmatprep.mubr.f32.mxu0 0.0
    %467 = vmatmul.mubr.f32.gmra.mrb[0].mxu0 %v322
    %v468 = vpop.f32.mrb[0].mxu0
    %v469 = vadd.f32 %v272, %v468
    %v470 = vpop.f32.mrb[0].mxu0
    %v471 = vadd.f32 %v274, %v470
    %472 = vmatprep.mubr.f32.mxu0 0.0
    %473 = vmatmul.mubr.f32.gmra.mrb[0].mxu0 %v325
    %v474 = vpop.f32.mrb[0].mxu0
    %v475 = vadd.f32 %v278, %v474
    %v476 = vpop.f32.mrb[0].mxu0
    %v477 = vadd.f32 %v280, %v476
    %478 = vmatprep.mubr.f32.mxu0 0.0
    %479 = vmatmul.mubr.f32.gmra.mrb[0].mxu0 %v328
    %v480 = vpop.f32.mrb[0].mxu0
    %v481 = vadd.f32 %v284, %v480
    %v482 = vpop.f32.mrb[0].mxu0
    %v483 = vadd.f32 %v286, %v482
    %484 = vdwg.mxu0
    %v485 = vld [vmem:[%s1] sm:$0xff]
    %v486 = vld [vmem:[%s1 + $0x8] sm:$0xff]
    %v487 = vld [vmem:[%s1 + $0x10] sm:$0xff]
    %v488 = vld [vmem:[%s1 + $0x18] sm:$0xff]
    %v489 = vld [vmem:[%s1 + $0x20] sm:$0xff]
    %v490 = vld [vmem:[%s1 + $0x28] sm:$0xff]
    %v491 = vld [vmem:[%s1 + $0x30] sm:$0xf]
    %v492 = vld [vmem:[%s1 + $0x38] sm:$0xf]
    %v494 = vsel %vm89, 0.0, 0
    %v497 = vsel %vm132, %v491, 0
    %v500 = vsel %vm132, %v492, 0
    %502 = vmatprep.subr.mxu0 %v486
    %503 = vmatpush1.msra.mxu0 %v485
    %504 = vmatprep.subr.mxu0 %v488
    %505 = vmatpush1.msra.mxu0 %v487
    %506 = vmatprep.subr.mxu0 %v490
    %507 = vmatpush1.msra.mxu0 %v489
    %508 = vmatprep.subr.mxu0 %v500
    %509 = vmatpush1.msra.mxu0 %v497
    %510 = vmatprep.subr.mxu0 0.0
    %511 = vmatpush1.msra.mxu0 0.0
    %512 = vmatprep.subr.mxu0 0.0
    %513 = vmatpush1.msra.mxu0 0.0
    %514 = vmatprep.subr.mxu0 0.0
    %515 = vmatpush1.msra.mxu0 0.0
    %516 = vmatprep.subr.mxu0 0.0
    %517 = vmatpush1.msra.mxu0 0.0
    %518 = vmatprep.subr.mxu0 0.0
    %519 = vmatpush1.msra.mxu0 0.0
    %520 = vmatprep.subr.mxu0 0.0
    %521 = vmatpush1.msra.mxu0 0.0
    %522 = vmatprep.subr.mxu0 0.0
    %523 = vmatpush1.msra.mxu0 0.0
    %524 = vmatprep.subr.mxu0 0.0
    %525 = vmatpush1.msra.mxu0 0.0
    %526 = vmatprep.subr.mxu0 0.0
    %527 = vmatpush1.msra.mxu0 0.0
    %528 = vmatprep.subr.mxu0 0.0
    %529 = vmatpush1.msra.mxu0 0.0
    %530 = vmatprep.subr.mxu0 0.0
    %531 = vmatpush1.msra.mxu0 0.0
    %532 = vmatprep.subr.mxu0 0.0
    %533 = vmatpush1.msra.mxu0 0.0
    %534 = vmatprep.subr.mxu0 0.0
    %535 = vmatpush1.msra.mxu0 0.0
    %536 = vmatprep.subr.mxu0 0.0
    %537 = vmatpush1.msra.mxu0 0.0
    %538 = vmatprep.subr.mxu0 0.0
    %539 = vmatpush1.msra.mxu0 0.0
    %540 = vmatprep.subr.mxu0 0.0
    %541 = vmatpush1.msra.mxu0 0.0
    %542 = vmatprep.subr.mxu0 0.0
    %543 = vmatpush1.msra.mxu0 0.0
    %544 = vmatprep.subr.mxu0 0.0
    %545 = vmatpush1.msra.mxu0 0.0
    %546 = vmatprep.subr.mxu0 0.0
    %547 = vmatpush1.msra.mxu0 0.0
    %548 = vmatprep.subr.mxu0 0.0
    %549 = vmatpush1.msra.mxu0 0.0
    %550 = vmatprep.subr.mxu0 0.0
    %551 = vmatpush1.msra.mxu0 0.0
    %552 = vmatprep.subr.mxu0 0.0
    %553 = vmatpush1.msra.mxu0 0.0
    %554 = vmatprep.subr.mxu0 0.0
    %555 = vmatpush1.msra.mxu0 0.0
    %556 = vmatprep.subr.mxu0 0.0
    %557 = vmatpush1.msra.mxu0 0.0
    %558 = vmatprep.subr.mxu0 0.0
    %559 = vmatpush1.msra.mxu0 0.0
    %560 = vmatprep.subr.mxu0 0.0
    %561 = vmatpush1.msra.mxu0 0.0
    %562 = vmatprep.subr.mxu0 0.0
    %563 = vmatpush1.msra.mxu0 0.0
    %564 = vmatprep.subr.mxu0 0.0
    %565 = vmatpush1.msra.mxu0 0.0
    %566 = vmatprep.mubr.f32.mxu0 0.0
    %567 = vmatmul.mubr.f32.gmra.mrb[0].mxu0 %v494
    %v568 = vpop.f32.mrb[0].mxu0
    %v569 = vadd.f32 0.0, %v568
    %v570 = vpop.f32.mrb[0].mxu0
    %v571 = vadd.f32 0.0, %v570
    %572 = vmatprep.mubr.f32.mxu0 0.0
    %573 = vmatmul.mubr.f32.gmra.mrb[0].mxu0 %v91
    %v574 = vpop.f32.mrb[0].mxu0
    %v575 = vadd.f32 0.0, %v574
    %v576 = vpop.f32.mrb[0].mxu0
    %v577 = vadd.f32 0.0, %v576
    %578 = vmatprep.mubr.f32.mxu0 0.0
    %579 = vmatmul.mubr.f32.gmra.mrb[0].mxu0 %v94
    %v580 = vpop.f32.mrb[0].mxu0
    %v581 = vadd.f32 0.0, %v580
    %v582 = vpop.f32.mrb[0].mxu0
    %v583 = vadd.f32 0.0, %v582
    %584 = vmatprep.mubr.f32.mxu0 0.0
    %585 = vmatmul.mubr.f32.gmra.mrb[0].mxu0 %v97
    %v586 = vpop.f32.mrb[0].mxu0
    %v587 = vadd.f32 0.0, %v586
    %v588 = vpop.f32.mrb[0].mxu0
    %v589 = vadd.f32 0.0, %v588
    %590 = vmatprep.mubr.f32.mxu0 0.0
    %591 = vmatmul.mubr.f32.gmra.mrb[0].mxu0 %v100
    %v592 = vpop.f32.mrb[0].mxu0
    %v593 = vadd.f32 0.0, %v592
    %v594 = vpop.f32.mrb[0].mxu0
    %v595 = vadd.f32 0.0, %v594
    %596 = vmatprep.mubr.f32.mxu0 0.0
    %597 = vmatmul.mubr.f32.gmra.mrb[0].mxu0 %v103
    %v598 = vpop.f32.mrb[0].mxu0
    %v599 = vadd.f32 0.0, %v598
    %v600 = vpop.f32.mrb[0].mxu0
    %v601 = vadd.f32 0.0, %v600
    %602 = vmatprep.mubr.f32.mxu0 0.0
    %603 = vmatmul.mubr.f32.gmra.mrb[0].mxu0 %v106
    %v604 = vpop.f32.mrb[0].mxu0
    %v605 = vadd.f32 0.0, %v604
    %v606 = vpop.f32.mrb[0].mxu0
    %v607 = vadd.f32 0.0, %v606
    %608 = vmatprep.mubr.f32.mxu0 0.0
    %609 = vmatmul.mubr.f32.gmra.mrb[0].mxu0 %v109
    %v610 = vpop.f32.mrb[0].mxu0
    %v611 = vadd.f32 0.0, %v610
    %v612 = vpop.f32.mrb[0].mxu0
    %v613 = vadd.f32 0.0, %v612
    %614 = vmatprep.mubr.f32.mxu0 0.0
    %615 = vmatmul.mubr.f32.gmra.mrb[0].mxu0 %v112
    %v616 = vpop.f32.mrb[0].mxu0
    %v617 = vadd.f32 0.0, %v616
    %v618 = vpop.f32.mrb[0].mxu0
    %v619 = vadd.f32 0.0, %v618
    %620 = vmatprep.mubr.f32.mxu0 0.0
    %621 = vmatmul.mubr.f32.gmra.mrb[0].mxu0 %v115
    %v622 = vpop.f32.mrb[0].mxu0
    %v623 = vadd.f32 0.0, %v622
    %v624 = vpop.f32.mrb[0].mxu0
    %v625 = vadd.f32 0.0, %v624
    %626 = vmatprep.mubr.f32.mxu0 0.0
    %627 = vmatmul.mubr.f32.gmra.mrb[0].mxu0 %v118
    %v628 = vpop.f32.mrb[0].mxu0
    %v629 = vadd.f32 0.0, %v628
    %v630 = vpop.f32.mrb[0].mxu0
    %v631 = vadd.f32 0.0, %v630
    %632 = vmatprep.mubr.f32.mxu0 0.0
    %633 = vmatmul.mubr.f32.gmra.mrb[0].mxu0 %v121
    %v634 = vpop.f32.mrb[0].mxu0
    %v635 = vadd.f32 0.0, %v634
    %v636 = vpop.f32.mrb[0].mxu0
    %v637 = vadd.f32 0.0, %v636
    %638 = vmatprep.mubr.f32.mxu0 0.0
    %639 = vmatmul.mubr.f32.gmra.mrb[0].mxu0 %v124
    %v640 = vpop.f32.mrb[0].mxu0
    %v641 = vadd.f32 0.0, %v640
    %v642 = vpop.f32.mrb[0].mxu0
    %v643 = vadd.f32 0.0, %v642
    %644 = vmatprep.mubr.f32.mxu0 0.0
    %645 = vmatmul.mubr.f32.gmra.mrb[0].mxu0 %v127
    %v646 = vpop.f32.mrb[0].mxu0
    %v647 = vadd.f32 0.0, %v646
    %v648 = vpop.f32.mrb[0].mxu0
    %v649 = vadd.f32 0.0, %v648
    %650 = vdwg.mxu0
    %v651 = vadd.f32 %v403, %v569
    %v652 = vadd.f32 %v405, %v571
    %v653 = vadd.f32 %v409, %v575
    %v654 = vadd.f32 %v411, %v577
    %v655 = vadd.f32 %v415, %v581
    %v656 = vadd.f32 %v417, %v583
    %v657 = vadd.f32 %v421, %v587
    %v658 = vadd.f32 %v423, %v589
    %v659 = vadd.f32 %v427, %v593
    %v660 = vadd.f32 %v429, %v595
    %v661 = vadd.f32 %v433, %v599
    %v662 = vadd.f32 %v435, %v601
    %v663 = vadd.f32 %v439, %v605
    %v664 = vadd.f32 %v441, %v607
    %v665 = vadd.f32 %v445, %v611
    %v666 = vadd.f32 %v447, %v613
    %v667 = vadd.f32 %v451, %v617
    %v668 = vadd.f32 %v453, %v619
    %v669 = vadd.f32 %v457, %v623
    %v670 = vadd.f32 %v459, %v625
    %v671 = vadd.f32 %v463, %v629
    %v672 = vadd.f32 %v465, %v631
    %v673 = vadd.f32 %v469, %v635
    %v674 = vadd.f32 %v471, %v637
    %v675 = vadd.f32 %v475, %v641
    %v676 = vadd.f32 %v477, %v643
    %v677 = vadd.f32 %v481, %v647
    %v678 = vadd.f32 %v483, %v649
    %v679 = vld [vmem:[%s4] sm:$0x3]
    %v681 = vlaneseq
    %v682 = vshrl.u32 %v681, 7
    %v683 = vsub.s32 0, %v682
    %v684 = vrot.slane %v679, %v683
    %v685 = vlaneseq
    %v686 = vshrl.u32 %v685, 7
    %v687 = vsub.s32 1, %v686
    %v688 = vrot.slane %v679, %v687
    %v691 = vadd.f32 %v651, %v684
    %v692 = vadd.f32 %v652, %v688
    %v693 = vadd.f32 %v653, %v684
    %v694 = vadd.f32 %v654, %v688
    %v695 = vadd.f32 %v655, %v684
    %v696 = vadd.f32 %v656, %v688
    %v697 = vadd.f32 %v657, %v684
    %v698 = vadd.f32 %v658, %v688
    %v699 = vadd.f32 %v659, %v684
    %v700 = vadd.f32 %v660, %v688
    %v701 = vadd.f32 %v661, %v684
    %v702 = vadd.f32 %v662, %v688
    %v703 = vadd.f32 %v663, %v684
    %v704 = vadd.f32 %v664, %v688
    %v705 = vadd.f32 %v665, %v684
    %v706 = vadd.f32 %v666, %v688
    %v707 = vadd.f32 %v667, %v684
    %v708 = vadd.f32 %v668, %v688
    %v709 = vadd.f32 %v669, %v684
    %v710 = vadd.f32 %v670, %v688
    %v711 = vadd.f32 %v671, %v684
    %v712 = vadd.f32 %v672, %v688
    %v713 = vadd.f32 %v673, %v684
    %v714 = vadd.f32 %v674, %v688
    %v715 = vadd.f32 %v675, %v684
    %v716 = vadd.f32 %v676, %v688
    %v717 = vadd.f32 %v677, %v684
    %v718 = vadd.f32 %v678, %v688
    %v719 = vmax.f32 %v691, 0.0
    %v720 = vmax.f32 %v692, 0.0
    %v721 = vmax.f32 %v693, 0.0
    %v722 = vmax.f32 %v694, 0.0
    %v723 = vmax.f32 %v695, 0.0
    %v724 = vmax.f32 %v696, 0.0
    %v725 = vmax.f32 %v697, 0.0
    %v726 = vmax.f32 %v698, 0.0
    %v727 = vmax.f32 %v699, 0.0
    %v728 = vmax.f32 %v700, 0.0
    %v729 = vmax.f32 %v701, 0.0
    %v730 = vmax.f32 %v702, 0.0
    %v731 = vmax.f32 %v703, 0.0
    %v732 = vmax.f32 %v704, 0.0
    %v733 = vmax.f32 %v705, 0.0
    %v734 = vmax.f32 %v706, 0.0
    %v735 = vmax.f32 %v707, 0.0
    %v736 = vmax.f32 %v708, 0.0
    %v737 = vmax.f32 %v709, 0.0
    %v738 = vmax.f32 %v710, 0.0
    %v739 = vmax.f32 %v711, 0.0
    %v740 = vmax.f32 %v712, 0.0
    %v741 = vmax.f32 %v713, 0.0
    %v742 = vmax.f32 %v714, 0.0
    %v743 = vmax.f32 %v715, 0.0
    %v744 = vmax.f32 %v716, 0.0
    %v745 = vmax.f32 %v717, 0.0
    %v746 = vmax.f32 %v718, 0.0
    %s747 = scalar_lea.vmem [#allocation2], 256
    %v748 = vld [vmem:[%s747] sm:$0xff]
    %v749 = vld [vmem:[%s747 + $0x8] sm:$0xff]
    %v750 = vld [vmem:[%s747 + $0x10] sm:$0xff]
    %v751 = vld [vmem:[%s747 + $0x18] sm:$0xff]
    %v752 = vld [vmem:[%s747 + $0x20] sm:$0xff]
    %v753 = vld [vmem:[%s747 + $0x28] sm:$0xff]
    %v754 = vld [vmem:[%s747 + $0x30] sm:$0xff]
    %v755 = vld [vmem:[%s747 + $0x38] sm:$0xff]
    %v756 = vld [vmem:[%s747 + $0x40] sm:$0xff]
    %v757 = vld [vmem:[%s747 + $0x48] sm:$0xff]
    %v758 = vld [vmem:[%s747 + $0x50] sm:$0xff]
    %v759 = vld [vmem:[%s747 + $0x58] sm:$0xff]
    %v760 = vld [vmem:[%s747 + $0x60] sm:$0xff]
    %v761 = vld [vmem:[%s747 + $0x68] sm:$0xff]
    %v762 = vld [vmem:[%s747 + $0x70] sm:$0xff]
    %v763 = vld [vmem:[%s747 + $0x78] sm:$0xff]
    %v764 = vld [vmem:[%s747 + $0x80] sm:$0xff]
    %v765 = vld [vmem:[%s747 + $0x88] sm:$0xff]
    %v766 = vld [vmem:[%s747 + $0x90] sm:$0xff]
    %v767 = vld [vmem:[%s747 + $0x98] sm:$0xff]
    %v768 = vld [vmem:[%s747 + $0xa0] sm:$0xff]
    %v769 = vld [vmem:[%s747 + $0xa8] sm:$0xff]
    %v770 = vld [vmem:[%s747 + $0xb0] sm:$0xff]
    %v771 = vld [vmem:[%s747 + $0xb8] sm:$0xff]
    %v772 = vld [vmem:[%s747 + $0xc0] sm:$0xff]
    %v773 = vld [vmem:[%s747 + $0xc8] sm:$0xff]
    %v774 = vld [vmem:[%s747 + $0xd0] sm:$0xff]
    %v775 = vld [vmem:[%s747 + $0xd8] sm:$0xff]
    %v776 = vld [vmem:[%s747 + $0xe0] sm:$0xff]
    %v777 = vld [vmem:[%s747 + $0xe8] sm:$0xff]
    %v778 = vld [vmem:[%s747 + $0xf0] sm:$0xff]
    %v779 = vld [vmem:[%s747 + $0xf8] sm:$0xff]
    %s780 = scalar_lea.vmem [#allocation2], 512
    %v781 = vld [vmem:[%s780] sm:$0xff]
    %v782 = vld [vmem:[%s780 + $0x8] sm:$0xff]
    %v783 = vld [vmem:[%s780 + $0x10] sm:$0xff]
    %v784 = vld [vmem:[%s780 + $0x18] sm:$0xff]
    %v785 = vld [vmem:[%s780 + $0x20] sm:$0xff]
    %v786 = vld [vmem:[%s780 + $0x28] sm:$0xff]
    %v787 = vld [vmem:[%s780 + $0x30] sm:$0xff]
    %v788 = vld [vmem:[%s780 + $0x38] sm:$0xff]
    %v789 = vld [vmem:[%s780 + $0x40] sm:$0xff]
    %v790 = vld [vmem:[%s780 + $0x48] sm:$0xff]
    %v791 = vld [vmem:[%s780 + $0x50] sm:$0xff]
    %v792 = vld [vmem:[%s780 + $0x58] sm:$0xff]
    %v793 = vld [vmem:[%s780 + $0x60] sm:$0xff]
    %v794 = vld [vmem:[%s780 + $0x68] sm:$0xff]
    %v795 = vld [vmem:[%s780 + $0x70] sm:$0xff]
    %v796 = vld [vmem:[%s780 + $0x78] sm:$0xff]
    %v797 = vld [vmem:[%s780 + $0x80] sm:$0xff]
    %v798 = vld [vmem:[%s780 + $0x88] sm:$0xff]
    %v799 = vld [vmem:[%s780 + $0x90] sm:$0xff]
    %v800 = vld [vmem:[%s780 + $0x98] sm:$0xff]
    %v801 = vld [vmem:[%s780 + $0xa0] sm:$0xff]
    %v802 = vld [vmem:[%s780 + $0xa8] sm:$0xff]
    %v803 = vld [vmem:[%s780 + $0xb0] sm:$0xff]
    %v804 = vld [vmem:[%s780 + $0xb8] sm:$0xff]
    %v805 = vld [vmem:[%s780 + $0xc0] sm:$0xff]
    %v806 = vld [vmem:[%s780 + $0xc8] sm:$0xff]
    %v807 = vld [vmem:[%s780 + $0xd0] sm:$0xff]
    %v808 = vld [vmem:[%s780 + $0xd8] sm:$0xff]
    %v809 = vld [vmem:[%s780 + $0xe0] sm:$0xff]
    %v810 = vld [vmem:[%s780 + $0xe8] sm:$0xff]
    %v811 = vld [vmem:[%s780 + $0xf0] sm:$0xff]
    %v812 = vld [vmem:[%s780 + $0xf8] sm:$0xff]
    %813 = vmatprep.subr.mxu0 0.0
    %814 = vmatpush1.msra.mxu0 %v781
    %815 = vmatprep.subr.mxu0 0.0
    %816 = vmatpush1.msra.mxu0 %v782
    %817 = vmatprep.subr.mxu0 0.0
    %818 = vmatpush1.msra.mxu0 %v783
    %819 = vmatprep.subr.mxu0 0.0
    %820 = vmatpush1.msra.mxu0 %v784
    %821 = vmatprep.subr.mxu0 0.0
    %822 = vmatpush1.msra.mxu0 %v785
    %823 = vmatprep.subr.mxu0 0.0
    %824 = vmatpush1.msra.mxu0 %v786
    %825 = vmatprep.subr.mxu0 0.0
    %826 = vmatpush1.msra.mxu0 %v787
    %827 = vmatprep.subr.mxu0 0.0
    %828 = vmatpush1.msra.mxu0 %v788
    %829 = vmatprep.subr.mxu0 0.0
    %830 = vmatpush1.msra.mxu0 %v789
    %831 = vmatprep.subr.mxu0 0.0
    %832 = vmatpush1.msra.mxu0 %v790
    %833 = vmatprep.subr.mxu0 0.0
    %834 = vmatpush1.msra.mxu0 %v791
    %835 = vmatprep.subr.mxu0 0.0
    %836 = vmatpush1.msra.mxu0 %v792
    %837 = vmatprep.subr.mxu0 0.0
    %838 = vmatpush1.msra.mxu0 %v793
    %839 = vmatprep.subr.mxu0 0.0
    %840 = vmatpush1.msra.mxu0 %v794
    %841 = vmatprep.subr.mxu0 0.0
    %842 = vmatpush1.msra.mxu0 %v795
    %843 = vmatprep.subr.mxu0 0.0
    %844 = vmatpush1.msra.mxu0 %v796
    %845 = vmatprep.subr.mxu0 0.0
    %846 = vmatpush1.msra.mxu0 %v797
    %847 = vmatprep.subr.mxu0 0.0
    %848 = vmatpush1.msra.mxu0 %v798
    %849 = vmatprep.subr.mxu0 0.0
    %850 = vmatpush1.msra.mxu0 %v799
    %851 = vmatprep.subr.mxu0 0.0
    %852 = vmatpush1.msra.mxu0 %v800
    %853 = vmatprep.subr.mxu0 0.0
    %854 = vmatpush1.msra.mxu0 %v801
    %855 = vmatprep.subr.mxu0 0.0
    %856 = vmatpush1.msra.mxu0 %v802
    %857 = vmatprep.subr.mxu0 0.0
    %858 = vmatpush1.msra.mxu0 %v803
    %859 = vmatprep.subr.mxu0 0.0
    %860 = vmatpush1.msra.mxu0 %v804
    %861 = vmatprep.subr.mxu0 0.0
    %862 = vmatpush1.msra.mxu0 %v805
    %863 = vmatprep.subr.mxu0 0.0
    %864 = vmatpush1.msra.mxu0 %v806
    %865 = vmatprep.subr.mxu0 0.0
    %866 = vmatpush1.msra.mxu0 %v807
    %867 = vmatprep.subr.mxu0 0.0
    %868 = vmatpush1.msra.mxu0 %v808
    %869 = vmatprep.subr.mxu0 0.0
    %870 = vmatpush1.msra.mxu0 %v809
    %871 = vmatprep.subr.mxu0 0.0
    %872 = vmatpush1.msra.mxu0 %v810
    %873 = vmatprep.subr.mxu0 0.0
    %874 = vmatpush1.msra.mxu0 %v811
    %875 = vmatprep.subr.mxu0 0.0
    %876 = vmatpush1.msra.mxu0 %v812
    %877 = vmatprep.mubr.f32.mxu0 %v722
    %878 = vmatmul.mubr.f32.gmra.mrb[0].mxu0 %v721
    %v879 = vpop.f32.mrb[0].mxu0
    %v880 = vadd.f32 0.0, %v879
    %v881 = vpop.f32.mrb[0].mxu0
    %882 = vmatprep.mubr.f32.mxu0 %v726
    %883 = vmatmul.mubr.f32.gmra.mrb[0].mxu0 %v725
    %v884 = vpop.f32.mrb[0].mxu0
    %v885 = vadd.f32 0.0, %v884
    %v886 = vpop.f32.mrb[0].mxu0
    %887 = vmatprep.mubr.f32.mxu0 %v730
    %888 = vmatmul.mubr.f32.gmra.mrb[0].mxu0 %v729
    %v889 = vpop.f32.mrb[0].mxu0
    %v890 = vadd.f32 0.0, %v889
    %v891 = vpop.f32.mrb[0].mxu0
    %892 = vmatprep.mubr.f32.mxu0 %v734
    %893 = vmatmul.mubr.f32.gmra.mrb[0].mxu0 %v733
    %v894 = vpop.f32.mrb[0].mxu0
    %v895 = vadd.f32 0.0, %v894
    %v896 = vpop.f32.mrb[0].mxu0
    %897 = vmatprep.mubr.f32.mxu0 %v738
    %898 = vmatmul.mubr.f32.gmra.mrb[0].mxu0 %v737
    %v899 = vpop.f32.mrb[0].mxu0
    %v900 = vadd.f32 0.0, %v899
    %v901 = vpop.f32.mrb[0].mxu0
    %902 = vmatprep.mubr.f32.mxu0 %v742
    %903 = vmatmul.mubr.f32.gmra.mrb[0].mxu0 %v741
    %v904 = vpop.f32.mrb[0].mxu0
    %v905 = vadd.f32 0.0, %v904
    %v906 = vpop.f32.mrb[0].mxu0
    %907 = vmatprep.mubr.f32.mxu0 %v746
    %908 = vmatmul.mubr.f32.gmra.mrb[0].mxu0 %v745
    %v909 = vpop.f32.mrb[0].mxu0
    %v910 = vadd.f32 0.0, %v909
    %v911 = vpop.f32.mrb[0].mxu0
    %912 = vdwg.mxu0
    %913 = vmatprep.subr.mxu0 0.0
    %914 = vmatpush1.msra.mxu0 %v748
    %915 = vmatprep.subr.mxu0 0.0
    %916 = vmatpush1.msra.mxu0 %v749
    %917 = vmatprep.subr.mxu0 0.0
    %918 = vmatpush1.msra.mxu0 %v750
    %919 = vmatprep.subr.mxu0 0.0
    %920 = vmatpush1.msra.mxu0 %v751
    %921 = vmatprep.subr.mxu0 0.0
    %922 = vmatpush1.msra.mxu0 %v752
    %923 = vmatprep.subr.mxu0 0.0
    %924 = vmatpush1.msra.mxu0 %v753
    %925 = vmatprep.subr.mxu0 0.0
    %926 = vmatpush1.msra.mxu0 %v754
    %927 = vmatprep.subr.mxu0 0.0
    %928 = vmatpush1.msra.mxu0 %v755
    %929 = vmatprep.subr.mxu0 0.0
    %930 = vmatpush1.msra.mxu0 %v756
    %931 = vmatprep.subr.mxu0 0.0
    %932 = vmatpush1.msra.mxu0 %v757
    %933 = vmatprep.subr.mxu0 0.0
    %934 = vmatpush1.msra.mxu0 %v758
    %935 = vmatprep.subr.mxu0 0.0
    %936 = vmatpush1.msra.mxu0 %v759
    %937 = vmatprep.subr.mxu0 0.0
    %938 = vmatpush1.msra.mxu0 %v760
    %939 = vmatprep.subr.mxu0 0.0
    %940 = vmatpush1.msra.mxu0 %v761
    %941 = vmatprep.subr.mxu0 0.0
    %942 = vmatpush1.msra.mxu0 %v762
    %943 = vmatprep.subr.mxu0 0.0
    %944 = vmatpush1.msra.mxu0 %v763
    %945 = vmatprep.subr.mxu0 0.0
    %946 = vmatpush1.msra.mxu0 %v764
    %947 = vmatprep.subr.mxu0 0.0
    %948 = vmatpush1.msra.mxu0 %v765
    %949 = vmatprep.subr.mxu0 0.0
    %950 = vmatpush1.msra.mxu0 %v766
    %951 = vmatprep.subr.mxu0 0.0
    %952 = vmatpush1.msra.mxu0 %v767
    %953 = vmatprep.subr.mxu0 0.0
    %954 = vmatpush1.msra.mxu0 %v768
    %955 = vmatprep.subr.mxu0 0.0
    %956 = vmatpush1.msra.mxu0 %v769
    %957 = vmatprep.subr.mxu0 0.0
    %958 = vmatpush1.msra.mxu0 %v770
    %959 = vmatprep.subr.mxu0 0.0
    %960 = vmatpush1.msra.mxu0 %v771
    %961 = vmatprep.subr.mxu0 0.0
    %962 = vmatpush1.msra.mxu0 %v772
    %963 = vmatprep.subr.mxu0 0.0
    %964 = vmatpush1.msra.mxu0 %v773
    %965 = vmatprep.subr.mxu0 0.0
    %966 = vmatpush1.msra.mxu0 %v774
    %967 = vmatprep.subr.mxu0 0.0
    %968 = vmatpush1.msra.mxu0 %v775
    %969 = vmatprep.subr.mxu0 0.0
    %970 = vmatpush1.msra.mxu0 %v776
    %971 = vmatprep.subr.mxu0 0.0
    %972 = vmatpush1.msra.mxu0 %v777
    %973 = vmatprep.subr.mxu0 0.0
    %974 = vmatpush1.msra.mxu0 %v778
    %975 = vmatprep.subr.mxu0 0.0
    %976 = vmatpush1.msra.mxu0 %v779
    %977 = vmatprep.mubr.f32.mxu0 %v720
    %978 = vmatmul.mubr.f32.gmra.mrb[0].mxu0 %v719
    %v979 = vpop.f32.mrb[0].mxu0
    %v980 = vadd.f32 %v880, %v979
    %v981 = vpop.f32.mrb[0].mxu0
    %982 = vmatprep.mubr.f32.mxu0 %v724
    %983 = vmatmul.mubr.f32.gmra.mrb[0].mxu0 %v723
    %v984 = vpop.f32.mrb[0].mxu0
    %v985 = vadd.f32 %v885, %v984
    %v986 = vpop.f32.mrb[0].mxu0
    %987 = vmatprep.mubr.f32.mxu0 %v728
    %988 = vmatmul.mubr.f32.gmra.mrb[0].mxu0 %v727
    %v989 = vpop.f32.mrb[0].mxu0
    %v990 = vadd.f32 %v890, %v989
    %v991 = vpop.f32.mrb[0].mxu0
    %992 = vmatprep.mubr.f32.mxu0 %v732
    %993 = vmatmul.mubr.f32.gmra.mrb[0].mxu0 %v731
    %v994 = vpop.f32.mrb[0].mxu0
    %v995 = vadd.f32 %v895, %v994
    %v996 = vpop.f32.mrb[0].mxu0
    %997 = vmatprep.mubr.f32.mxu0 %v736
    %998 = vmatmul.mubr.f32.gmra.mrb[0].mxu0 %v735
    %v999 = vpop.f32.mrb[0].mxu0
    %v1000 = vadd.f32 %v900, %v999
    %v1001 = vpop.f32.mrb[0].mxu0
    %1002 = vmatprep.mubr.f32.mxu0 %v740
    %1003 = vmatmul.mubr.f32.gmra.mrb[0].mxu0 %v739
    %v1004 = vpop.f32.mrb[0].mxu0
    %v1005 = vadd.f32 %v905, %v1004
    %v1006 = vpop.f32.mrb[0].mxu0
    %1007 = vmatprep.mubr.f32.mxu0 %v744
    %1008 = vmatmul.mubr.f32.gmra.mrb[0].mxu0 %v743
    %v1009 = vpop.f32.mrb[0].mxu0
    %v1010 = vadd.f32 %v910, %v1009
    %v1011 = vpop.f32.mrb[0].mxu0
    %1012 = vdwg.mxu0
    %v1013 = vld [vmem:[#allocation2] sm:$0xff]
    %v1014 = vld [vmem:[#allocation2 + $0x8] sm:$0xff]
    %v1015 = vld [vmem:[#allocation2 + $0x10] sm:$0xff]
    %v1016 = vld [vmem:[#allocation2 + $0x18] sm:$0xff]
    %v1017 = vld [vmem:[#allocation2 + $0x20] sm:$0xff]
    %v1018 = vld [vmem:[#allocation2 + $0x28] sm:$0xff]
    %v1019 = vld [vmem:[#allocation2 + $0x30] sm:$0xff]
    %v1020 = vld [vmem:[#allocation2 + $0x38] sm:$0xff]
    %v1021 = vld [vmem:[#allocation2 + $0x40] sm:$0xff]
    %v1022 = vld [vmem:[#allocation2 + $0x48] sm:$0xff]
    %v1023 = vld [vmem:[#allocation2 + $0x50] sm:$0xff]
    %v1024 = vld [vmem:[#allocation2 + $0x58] sm:$0xff]
    %v1025 = vld [vmem:[#allocation2 + $0x60] sm:$0xff]
    %v1026 = vld [vmem:[#allocation2 + $0x68] sm:$0xff]
    %v1027 = vld [vmem:[#allocation2 + $0x70] sm:$0xff]
    %v1028 = vld [vmem:[#allocation2 + $0x78] sm:$0xff]
    %v1029 = vld [vmem:[#allocation2 + $0x80] sm:$0xff]
    %v1030 = vld [vmem:[#allocation2 + $0x88] sm:$0xff]
    %v1031 = vld [vmem:[#allocation2 + $0x90] sm:$0xff]
    %v1032 = vld [vmem:[#allocation2 + $0x98] sm:$0xff]
    %v1033 = vld [vmem:[#allocation2 + $0xa0] sm:$0xff]
    %v1034 = vld [vmem:[#allocation2 + $0xa8] sm:$0xff]
    %v1035 = vld [vmem:[#allocation2 + $0xb0] sm:$0xff]
    %v1036 = vld [vmem:[#allocation2 + $0xb8] sm:$0xff]
    %v1037 = vld [vmem:[#allocation2 + $0xc0] sm:$0xff]
    %v1038 = vld [vmem:[#allocation2 + $0xc8] sm:$0xff]
    %v1039 = vld [vmem:[#allocation2 + $0xd0] sm:$0xff]
    %v1040 = vld [vmem:[#allocation2 + $0xd8] sm:$0xff]
    %v1041 = vld [vmem:[#allocation2 + $0xe0] sm:$0xff]
    %v1042 = vld [vmem:[#allocation2 + $0xe8] sm:$0xff]
    %v1043 = vld [vmem:[#allocation2 + $0xf0] sm:$0xff]
    %v1044 = vld [vmem:[#allocation2 + $0xf8] sm:$0xff]
    %1045 = vmatprep.subr.mxu0 0.0
    %1046 = vmatpush1.msra.mxu0 %v1013
    %1047 = vmatprep.subr.mxu0 0.0
    %1048 = vmatpush1.msra.mxu0 %v1014
    %1049 = vmatprep.subr.mxu0 0.0
    %1050 = vmatpush1.msra.mxu0 %v1015
    %1051 = vmatprep.subr.mxu0 0.0
    %1052 = vmatpush1.msra.mxu0 %v1016
    %1053 = vmatprep.subr.mxu0 0.0
    %1054 = vmatpush1.msra.mxu0 %v1017
    %1055 = vmatprep.subr.mxu0 0.0
    %1056 = vmatpush1.msra.mxu0 %v1018
    %1057 = vmatprep.subr.mxu0 0.0
    %1058 = vmatpush1.msra.mxu0 %v1019
    %1059 = vmatprep.subr.mxu0 0.0
    %1060 = vmatpush1.msra.mxu0 %v1020
    %1061 = vmatprep.subr.mxu0 0.0
    %1062 = vmatpush1.msra.mxu0 %v1021
    %1063 = vmatprep.subr.mxu0 0.0
    %1064 = vmatpush1.msra.mxu0 %v1022
    %1065 = vmatprep.subr.mxu0 0.0
    %1066 = vmatpush1.msra.mxu0 %v1023
    %1067 = vmatprep.subr.mxu0 0.0
    %1068 = vmatpush1.msra.mxu0 %v1024
    %1069 = vmatprep.subr.mxu0 0.0
    %1070 = vmatpush1.msra.mxu0 %v1025
    %1071 = vmatprep.subr.mxu0 0.0
    %1072 = vmatpush1.msra.mxu0 %v1026
    %1073 = vmatprep.subr.mxu0 0.0
    %1074 = vmatpush1.msra.mxu0 %v1027
    %1075 = vmatprep.subr.mxu0 0.0
    %1076 = vmatpush1.msra.mxu0 %v1028
    %1077 = vmatprep.subr.mxu0 0.0
    %1078 = vmatpush1.msra.mxu0 %v1029
    %1079 = vmatprep.subr.mxu0 0.0
    %1080 = vmatpush1.msra.mxu0 %v1030
    %1081 = vmatprep.subr.mxu0 0.0
    %1082 = vmatpush1.msra.mxu0 %v1031
    %1083 = vmatprep.subr.mxu0 0.0
    %1084 = vmatpush1.msra.mxu0 %v1032
    %1085 = vmatprep.subr.mxu0 0.0
    %1086 = vmatpush1.msra.mxu0 %v1033
    %1087 = vmatprep.subr.mxu0 0.0
    %1088 = vmatpush1.msra.mxu0 %v1034
    %1089 = vmatprep.subr.mxu0 0.0
    %1090 = vmatpush1.msra.mxu0 %v1035
    %1091 = vmatprep.subr.mxu0 0.0
    %1092 = vmatpush1.msra.mxu0 %v1036
    %1093 = vmatprep.subr.mxu0 0.0
    %1094 = vmatpush1.msra.mxu0 %v1037
    %1095 = vmatprep.subr.mxu0 0.0
    %1096 = vmatpush1.msra.mxu0 %v1038
    %1097 = vmatprep.subr.mxu0 0.0
    %1098 = vmatpush1.msra.mxu0 %v1039
    %1099 = vmatprep.subr.mxu0 0.0
    %1100 = vmatpush1.msra.mxu0 %v1040
    %1101 = vmatprep.subr.mxu0 0.0
    %1102 = vmatpush1.msra.mxu0 %v1041
    %1103 = vmatprep.subr.mxu0 0.0
    %1104 = vmatpush1.msra.mxu0 %v1042
    %1105 = vmatprep.subr.mxu0 0.0
    %1106 = vmatpush1.msra.mxu0 %v1043
    %1107 = vmatprep.subr.mxu0 0.0
    %1108 = vmatpush1.msra.mxu0 %v1044
    %1109 = vmatprep.mubr.f32.mxu0 0.0
    %1110 = vmatmul.mubr.f32.gmra.mrb[0].mxu0 0.0
    %v1111 = vpop.f32.mrb[0].mxu0
    %v1112 = vadd.f32 0.0, %v1111
    %v1113 = vpop.f32.mrb[0].mxu0
    %1114 = vmatprep.mubr.f32.mxu0 %v722
    %1115 = vmatmul.mubr.f32.gmra.mrb[0].mxu0 %v721
    %v1116 = vpop.f32.mrb[0].mxu0
    %v1117 = vadd.f32 0.0, %v1116
    %v1118 = vpop.f32.mrb[0].mxu0
    %1119 = vmatprep.mubr.f32.mxu0 %v726
    %1120 = vmatmul.mubr.f32.gmra.mrb[0].mxu0 %v725
    %v1121 = vpop.f32.mrb[0].mxu0
    %v1122 = vadd.f32 0.0, %v1121
    %v1123 = vpop.f32.mrb[0].mxu0
    %1124 = vmatprep.mubr.f32.mxu0 %v730
    %1125 = vmatmul.mubr.f32.gmra.mrb[0].mxu0 %v729
    %v1126 = vpop.f32.mrb[0].mxu0
    %v1127 = vadd.f32 0.0, %v1126
    %v1128 = vpop.f32.mrb[0].mxu0
    %1129 = vmatprep.mubr.f32.mxu0 %v734
    %1130 = vmatmul.mubr.f32.gmra.mrb[0].mxu0 %v733
    %v1131 = vpop.f32.mrb[0].mxu0
    %v1132 = vadd.f32 0.0, %v1131
    %v1133 = vpop.f32.mrb[0].mxu0
    %1134 = vmatprep.mubr.f32.mxu0 %v738
    %1135 = vmatmul.mubr.f32.gmra.mrb[0].mxu0 %v737
    %v1136 = vpop.f32.mrb[0].mxu0
    %v1137 = vadd.f32 0.0, %v1136
    %v1138 = vpop.f32.mrb[0].mxu0
    %1139 = vmatprep.mubr.f32.mxu0 %v742
    %1140 = vmatmul.mubr.f32.gmra.mrb[0].mxu0 %v741
    %v1141 = vpop.f32.mrb[0].mxu0
    %v1142 = vadd.f32 0.0, %v1141
    %v1143 = vpop.f32.mrb[0].mxu0
    %1144 = vdwg.mxu0
    %v1145 = vadd.f32 %v980, %v1112
    %v1146 = vadd.f32 %v985, %v1117
    %v1147 = vadd.f32 %v990, %v1122
    %v1148 = vadd.f32 %v995, %v1127
    %v1149 = vadd.f32 %v1000, %v1132
    %v1150 = vadd.f32 %v1005, %v1137
    %v1151 = vadd.f32 %v1010, %v1142
    %v1152 = vld [vmem:[%s5] sm:$0x1]
    %v1154 = vlaneseq
    %v1155 = vshrl.u32 %v1154, 7
    %v1156 = vsub.s32 0, %v1155
    %v1157 = vrot.slane %v1152, %v1156
    %v1159 = vadd.f32 %v1145, %v1157
    %v1160 = vadd.f32 %v1146, %v1157
    %v1161 = vadd.f32 %v1147, %v1157
    %v1162 = vadd.f32 %v1148, %v1157
    %v1163 = vadd.f32 %v1149, %v1157
    %v1164 = vadd.f32 %v1150, %v1157
    %v1165 = vadd.f32 %v1151, %v1157
    %v1166 = vmax.f32 %v1159, 0.0
    %v1167 = vmax.f32 %v1160, 0.0
    %v1168 = vmax.f32 %v1161, 0.0
    %v1169 = vmax.f32 %v1162, 0.0
    %v1170 = vmax.f32 %v1163, 0.0
    %v1171 = vmax.f32 %v1164, 0.0
    %v1172 = vmax.f32 %v1165, 0.0
    %s1173 = scalar_lea.vmem %s3, 128
    %v1174 = vld [vmem:[%s1173] sm:$0xff]
    %v1175 = vld [vmem:[%s1173 + $0x8] sm:$0xff]
    %v1176 = vld [vmem:[%s1173 + $0x10] sm:$0xff]
    %v1177 = vld [vmem:[%s1173 + $0x18] sm:$0xff]
    %v1178 = vld [vmem:[%s1173 + $0x20] sm:$0xff]
    %v1179 = vld [vmem:[%s1173 + $0x28] sm:$0xff]
    %v1180 = vld [vmem:[%s1173 + $0x30] sm:$0xff]
    %v1181 = vld [vmem:[%s1173 + $0x38] sm:$0xff]
    %v1182 = vld [vmem:[%s1173 + $0x40] sm:$0xff]
    %v1183 = vld [vmem:[%s1173 + $0x48] sm:$0xff]
    %v1184 = vld [vmem:[%s1173 + $0x50] sm:$0xff]
    %v1185 = vld [vmem:[%s1173 + $0x58] sm:$0xff]
    %v1186 = vld [vmem:[%s1173 + $0x60] sm:$0xff]
    %v1187 = vld [vmem:[%s1173 + $0x68] sm:$0xff]
    %v1188 = vld [vmem:[%s1173 + $0x70] sm:$0xff]
    %v1189 = vld [vmem:[%s1173 + $0x78] sm:$0xff]
    %s1190 = scalar_lea.vmem %s3, 256
    %v1191 = vld [vmem:[%s1190] sm:$0xff]
    %v1192 = vld [vmem:[%s1190 + $0x8] sm:$0xff]
    %v1193 = vld [vmem:[%s1190 + $0x10] sm:$0xff]
    %v1194 = vld [vmem:[%s1190 + $0x18] sm:$0xff]
    %v1195 = vld [vmem:[%s1190 + $0x20] sm:$0xff]
    %v1196 = vld [vmem:[%s1190 + $0x28] sm:$0xff]
    %v1197 = vld [vmem:[%s1190 + $0x30] sm:$0xff]
    %v1198 = vld [vmem:[%s1190 + $0x38] sm:$0xff]
    %v1199 = vld [vmem:[%s1190 + $0x40] sm:$0xff]
    %v1200 = vld [vmem:[%s1190 + $0x48] sm:$0xff]
    %v1201 = vld [vmem:[%s1190 + $0x50] sm:$0xff]
    %v1202 = vld [vmem:[%s1190 + $0x58] sm:$0xff]
    %v1203 = vld [vmem:[%s1190 + $0x60] sm:$0xff]
    %v1204 = vld [vmem:[%s1190 + $0x68] sm:$0xff]
    %v1205 = vld [vmem:[%s1190 + $0x70] sm:$0xff]
    %v1206 = vld [vmem:[%s1190 + $0x78] sm:$0xff]
    %1207 = vmatprep.subr.mxu0 0.0
    %1208 = vmatpush1.msra.mxu0 %v1191
    %1209 = vmatprep.subr.mxu0 0.0
    %1210 = vmatpush1.msra.mxu0 %v1192
    %1211 = vmatprep.subr.mxu0 0.0
    %1212 = vmatpush1.msra.mxu0 %v1193
    %1213 = vmatprep.subr.mxu0 0.0
    %1214 = vmatpush1.msra.mxu0 %v1194
    %1215 = vmatprep.subr.mxu0 0.0
    %1216 = vmatpush1.msra.mxu0 %v1195
    %1217 = vmatprep.subr.mxu0 0.0
    %1218 = vmatpush1.msra.mxu0 %v1196
    %1219 = vmatprep.subr.mxu0 0.0
    %1220 = vmatpush1.msra.mxu0 %v1197
    %1221 = vmatprep.subr.mxu0 0.0
    %1222 = vmatpush1.msra.mxu0 %v1198
    %1223 = vmatprep.subr.mxu0 0.0
    %1224 = vmatpush1.msra.mxu0 %v1199
    %1225 = vmatprep.subr.mxu0 0.0
    %1226 = vmatpush1.msra.mxu0 %v1200
    %1227 = vmatprep.subr.mxu0 0.0
    %1228 = vmatpush1.msra.mxu0 %v1201
    %1229 = vmatprep.subr.mxu0 0.0
    %1230 = vmatpush1.msra.mxu0 %v1202
    %1231 = vmatprep.subr.mxu0 0.0
    %1232 = vmatpush1.msra.mxu0 %v1203
    %1233 = vmatprep.subr.mxu0 0.0
    %1234 = vmatpush1.msra.mxu0 %v1204
    %1235 = vmatprep.subr.mxu0 0.0
    %1236 = vmatpush1.msra.mxu0 %v1205
    %1237 = vmatprep.subr.mxu0 0.0
    %1238 = vmatpush1.msra.mxu0 %v1206
    %1239 = vmatprep.subr.mxu0 0.0
    %1240 = vmatpush1.msra.mxu0 0.0
    %1241 = vmatprep.subr.mxu0 0.0
    %1242 = vmatpush1.msra.mxu0 0.0
    %1243 = vmatprep.subr.mxu0 0.0
    %1244 = vmatpush1.msra.mxu0 0.0
    %1245 = vmatprep.subr.mxu0 0.0
    %1246 = vmatpush1.msra.mxu0 0.0
    %1247 = vmatprep.subr.mxu0 0.0
    %1248 = vmatpush1.msra.mxu0 0.0
    %1249 = vmatprep.subr.mxu0 0.0
    %1250 = vmatpush1.msra.mxu0 0.0
    %1251 = vmatprep.subr.mxu0 0.0
    %1252 = vmatpush1.msra.mxu0 0.0
    %1253 = vmatprep.subr.mxu0 0.0
    %1254 = vmatpush1.msra.mxu0 0.0
    %1255 = vmatprep.subr.mxu0 0.0
    %1256 = vmatpush1.msra.mxu0 0.0
    %1257 = vmatprep.subr.mxu0 0.0
    %1258 = vmatpush1.msra.mxu0 0.0
    %1259 = vmatprep.subr.mxu0 0.0
    %1260 = vmatpush1.msra.mxu0 0.0
    %1261 = vmatprep.subr.mxu0 0.0
    %1262 = vmatpush1.msra.mxu0 0.0
    %1263 = vmatprep.subr.mxu0 0.0
    %1264 = vmatpush1.msra.mxu0 0.0
    %1265 = vmatprep.subr.mxu0 0.0
    %1266 = vmatpush1.msra.mxu0 0.0
    %1267 = vmatprep.subr.mxu0 0.0
    %1268 = vmatpush1.msra.mxu0 0.0
    %1269 = vmatprep.subr.mxu0 0.0
    %1270 = vmatpush1.msra.mxu0 0.0
    %1271 = vmatprep.mubr.f32.mxu0 0.0
    %1272 = vmatmul.mubr.f32.gmra.mrb[0].mxu0 %v1167
    %v1273 = vpop.f32.mrb[0].mxu0
    %v1274 = vadd.f32 0.0, %v1273
    %v1275 = vpop.f32.mrb[0].mxu0
    %1276 = vmatprep.mubr.f32.mxu0 0.0
    %1277 = vmatmul.mubr.f32.gmra.mrb[0].mxu0 %v1169
    %v1278 = vpop.f32.mrb[0].mxu0
    %v1279 = vadd.f32 0.0, %v1278
    %v1280 = vpop.f32.mrb[0].mxu0
    %1281 = vmatprep.mubr.f32.mxu0 0.0
    %1282 = vmatmul.mubr.f32.gmra.mrb[0].mxu0 %v1171
    %v1283 = vpop.f32.mrb[0].mxu0
    %v1284 = vadd.f32 0.0, %v1283
    %v1285 = vpop.f32.mrb[0].mxu0
    %1286 = vmatprep.mubr.f32.mxu0 0.0
    %1287 = vmatmul.mubr.f32.gmra.mrb[0].mxu0 0.0
    %v1288 = vpop.f32.mrb[0].mxu0
    %v1289 = vadd.f32 0.0, %v1288
    %v1290 = vpop.f32.mrb[0].mxu0
    %1291 = vdwg.mxu0
    %1292 = vmatprep.subr.mxu0 0.0
    %1293 = vmatpush1.msra.mxu0 %v1174
    %1294 = vmatprep.subr.mxu0 0.0
    %1295 = vmatpush1.msra.mxu0 %v1175
    %1296 = vmatprep.subr.mxu0 0.0
    %1297 = vmatpush1.msra.mxu0 %v1176
    %1298 = vmatprep.subr.mxu0 0.0
    %1299 = vmatpush1.msra.mxu0 %v1177
    %1300 = vmatprep.subr.mxu0 0.0
    %1301 = vmatpush1.msra.mxu0 %v1178
    %1302 = vmatprep.subr.mxu0 0.0
    %1303 = vmatpush1.msra.mxu0 %v1179
    %1304 = vmatprep.subr.mxu0 0.0
    %1305 = vmatpush1.msra.mxu0 %v1180
    %1306 = vmatprep.subr.mxu0 0.0
    %1307 = vmatpush1.msra.mxu0 %v1181
    %1308 = vmatprep.subr.mxu0 0.0
    %1309 = vmatpush1.msra.mxu0 %v1182
    %1310 = vmatprep.subr.mxu0 0.0
    %1311 = vmatpush1.msra.mxu0 %v1183
    %1312 = vmatprep.subr.mxu0 0.0
    %1313 = vmatpush1.msra.mxu0 %v1184
    %1314 = vmatprep.subr.mxu0 0.0
    %1315 = vmatpush1.msra.mxu0 %v1185
    %1316 = vmatprep.subr.mxu0 0.0
    %1317 = vmatpush1.msra.mxu0 %v1186
    %1318 = vmatprep.subr.mxu0 0.0
    %1319 = vmatpush1.msra.mxu0 %v1187
    %1320 = vmatprep.subr.mxu0 0.0
    %1321 = vmatpush1.msra.mxu0 %v1188
    %1322 = vmatprep.subr.mxu0 0.0
    %1323 = vmatpush1.msra.mxu0 %v1189
    %1324 = vmatprep.subr.mxu0 0.0
    %1325 = vmatpush1.msra.mxu0 0.0
    %1326 = vmatprep.subr.mxu0 0.0
    %1327 = vmatpush1.msra.mxu0 0.0
    %1328 = vmatprep.subr.mxu0 0.0
    %1329 = vmatpush1.msra.mxu0 0.0
    %1330 = vmatprep.subr.mxu0 0.0
    %1331 = vmatpush1.msra.mxu0 0.0
    %1332 = vmatprep.subr.mxu0 0.0
    %1333 = vmatpush1.msra.mxu0 0.0
    %1334 = vmatprep.subr.mxu0 0.0
    %1335 = vmatpush1.msra.mxu0 0.0
    %1336 = vmatprep.subr.mxu0 0.0
    %1337 = vmatpush1.msra.mxu0 0.0
    %1338 = vmatprep.subr.mxu0 0.0
    %1339 = vmatpush1.msra.mxu0 0.0
    %1340 = vmatprep.subr.mxu0 0.0
    %1341 = vmatpush1.msra.mxu0 0.0
    %1342 = vmatprep.subr.mxu0 0.0
    %1343 = vmatpush1.msra.mxu0 0.0
    %1344 = vmatprep.subr.mxu0 0.0
    %1345 = vmatpush1.msra.mxu0 0.0
    %1346 = vmatprep.subr.mxu0 0.0
    %1347 = vmatpush1.msra.mxu0 0.0
    %1348 = vmatprep.subr.mxu0 0.0
    %1349 = vmatpush1.msra.mxu0 0.0
    %1350 = vmatprep.subr.mxu0 0.0
    %1351 = vmatpush1.msra.mxu0 0.0
    %1352 = vmatprep.subr.mxu0 0.0
    %1353 = vmatpush1.msra.mxu0 0.0
    %1354 = vmatprep.subr.mxu0 0.0
    %1355 = vmatpush1.msra.mxu0 0.0
    %1356 = vmatprep.mubr.f32.mxu0 0.0
    %1357 = vmatmul.mubr.f32.gmra.mrb[0].mxu0 %v1166
    %v1358 = vpop.f32.mrb[0].mxu0
    %v1359 = vadd.f32 %v1274, %v1358
    %v1360 = vpop.f32.mrb[0].mxu0
    %1361 = vmatprep.mubr.f32.mxu0 0.0
    %1362 = vmatmul.mubr.f32.gmra.mrb[0].mxu0 %v1168
    %v1363 = vpop.f32.mrb[0].mxu0
    %v1364 = vadd.f32 %v1279, %v1363
    %v1365 = vpop.f32.mrb[0].mxu0
    %1366 = vmatprep.mubr.f32.mxu0 0.0
    %1367 = vmatmul.mubr.f32.gmra.mrb[0].mxu0 %v1170
    %v1368 = vpop.f32.mrb[0].mxu0
    %v1369 = vadd.f32 %v1284, %v1368
    %v1370 = vpop.f32.mrb[0].mxu0
    %1371 = vmatprep.mubr.f32.mxu0 0.0
    %1372 = vmatmul.mubr.f32.gmra.mrb[0].mxu0 %v1172
    %v1373 = vpop.f32.mrb[0].mxu0
    %v1374 = vadd.f32 %v1289, %v1373
    %v1375 = vpop.f32.mrb[0].mxu0
    %1376 = vdwg.mxu0
    %v1377 = vld [vmem:[%s3] sm:$0xff]
    %v1378 = vld [vmem:[%s3 + $0x8] sm:$0xff]
    %v1379 = vld [vmem:[%s3 + $0x10] sm:$0xff]
    %v1380 = vld [vmem:[%s3 + $0x18] sm:$0xff]
    %v1381 = vld [vmem:[%s3 + $0x20] sm:$0xff]
    %v1382 = vld [vmem:[%s3 + $0x28] sm:$0xff]
    %v1383 = vld [vmem:[%s3 + $0x30] sm:$0xff]
    %v1384 = vld [vmem:[%s3 + $0x38] sm:$0xff]
    %v1385 = vld [vmem:[%s3 + $0x40] sm:$0xff]
    %v1386 = vld [vmem:[%s3 + $0x48] sm:$0xff]
    %v1387 = vld [vmem:[%s3 + $0x50] sm:$0xff]
    %v1388 = vld [vmem:[%s3 + $0x58] sm:$0xff]
    %v1389 = vld [vmem:[%s3 + $0x60] sm:$0xff]
    %v1390 = vld [vmem:[%s3 + $0x68] sm:$0xff]
    %v1391 = vld [vmem:[%s3 + $0x70] sm:$0xff]
    %v1392 = vld [vmem:[%s3 + $0x78] sm:$0xff]
    %1393 = vmatprep.subr.mxu0 0.0
    %1394 = vmatpush1.msra.mxu0 %v1377
    %1395 = vmatprep.subr.mxu0 0.0
    %1396 = vmatpush1.msra.mxu0 %v1378
    %1397 = vmatprep.subr.mxu0 0.0
    %1398 = vmatpush1.msra.mxu0 %v1379
    %1399 = vmatprep.subr.mxu0 0.0
    %1400 = vmatpush1.msra.mxu0 %v1380
    %1401 = vmatprep.subr.mxu0 0.0
    %1402 = vmatpush1.msra.mxu0 %v1381
    %1403 = vmatprep.subr.mxu0 0.0
    %1404 = vmatpush1.msra.mxu0 %v1382
    %1405 = vmatprep.subr.mxu0 0.0
    %1406 = vmatpush1.msra.mxu0 %v1383
    %1407 = vmatprep.subr.mxu0 0.0
    %1408 = vmatpush1.msra.mxu0 %v1384
    %1409 = vmatprep.subr.mxu0 0.0
    %1410 = vmatpush1.msra.mxu0 %v1385
    %1411 = vmatprep.subr.mxu0 0.0
    %1412 = vmatpush1.msra.mxu0 %v1386
    %1413 = vmatprep.subr.mxu0 0.0
    %1414 = vmatpush1.msra.mxu0 %v1387
    %1415 = vmatprep.subr.mxu0 0.0
    %1416 = vmatpush1.msra.mxu0 %v1388
    %1417 = vmatprep.subr.mxu0 0.0
    %1418 = vmatpush1.msra.mxu0 %v1389
    %1419 = vmatprep.subr.mxu0 0.0
    %1420 = vmatpush1.msra.mxu0 %v1390
    %1421 = vmatprep.subr.mxu0 0.0
    %1422 = vmatpush1.msra.mxu0 %v1391
    %1423 = vmatprep.subr.mxu0 0.0
    %1424 = vmatpush1.msra.mxu0 %v1392
    %1425 = vmatprep.subr.mxu0 0.0
    %1426 = vmatpush1.msra.mxu0 0.0
    %1427 = vmatprep.subr.mxu0 0.0
    %1428 = vmatpush1.msra.mxu0 0.0
    %1429 = vmatprep.subr.mxu0 0.0
    %1430 = vmatpush1.msra.mxu0 0.0
    %1431 = vmatprep.subr.mxu0 0.0
    %1432 = vmatpush1.msra.mxu0 0.0
    %1433 = vmatprep.subr.mxu0 0.0
    %1434 = vmatpush1.msra.mxu0 0.0
    %1435 = vmatprep.subr.mxu0 0.0
    %1436 = vmatpush1.msra.mxu0 0.0
    %1437 = vmatprep.subr.mxu0 0.0
    %1438 = vmatpush1.msra.mxu0 0.0
    %1439 = vmatprep.subr.mxu0 0.0
    %1440 = vmatpush1.msra.mxu0 0.0
    %1441 = vmatprep.subr.mxu0 0.0
    %1442 = vmatpush1.msra.mxu0 0.0
    %1443 = vmatprep.subr.mxu0 0.0
    %1444 = vmatpush1.msra.mxu0 0.0
    %1445 = vmatprep.subr.mxu0 0.0
    %1446 = vmatpush1.msra.mxu0 0.0
    %1447 = vmatprep.subr.mxu0 0.0
    %1448 = vmatpush1.msra.mxu0 0.0
    %1449 = vmatprep.subr.mxu0 0.0
    %1450 = vmatpush1.msra.mxu0 0.0
    %1451 = vmatprep.subr.mxu0 0.0
    %1452 = vmatpush1.msra.mxu0 0.0
    %1453 = vmatprep.subr.mxu0 0.0
    %1454 = vmatpush1.msra.mxu0 0.0
    %1455 = vmatprep.subr.mxu0 0.0
    %1456 = vmatpush1.msra.mxu0 0.0
    %1457 = vmatprep.mubr.f32.mxu0 0.0
    %1458 = vmatmul.mubr.f32.gmra.mrb[0].mxu0 0.0
    %v1459 = vpop.f32.mrb[0].mxu0
    %v1460 = vadd.f32 0.0, %v1459
    %v1461 = vpop.f32.mrb[0].mxu0
    %1462 = vmatprep.mubr.f32.mxu0 0.0
    %1463 = vmatmul.mubr.f32.gmra.mrb[0].mxu0 %v1167
    %v1464 = vpop.f32.mrb[0].mxu0
    %v1465 = vadd.f32 0.0, %v1464
    %v1466 = vpop.f32.mrb[0].mxu0
    %1467 = vmatprep.mubr.f32.mxu0 0.0
    %1468 = vmatmul.mubr.f32.gmra.mrb[0].mxu0 %v1169
    %v1469 = vpop.f32.mrb[0].mxu0
    %v1470 = vadd.f32 0.0, %v1469
    %v1471 = vpop.f32.mrb[0].mxu0
    %1472 = vmatprep.mubr.f32.mxu0 0.0
    %1473 = vmatmul.mubr.f32.gmra.mrb[0].mxu0 %v1171
    %v1474 = vpop.f32.mrb[0].mxu0
    %v1475 = vadd.f32 0.0, %v1474
    %v1476 = vpop.f32.mrb[0].mxu0
    %1477 = vdwg.mxu0
    %v1478 = vadd.f32 %v1359, %v1460
    %v1479 = vadd.f32 %v1364, %v1465
    %v1480 = vadd.f32 %v1369, %v1470
    %v1481 = vadd.f32 %v1374, %v1475
    %v1482 = vld [vmem:[%s6] sm:$0x1]
    %v1484 = vlaneseq
    %v1485 = vshrl.u32 %v1484, 7
    %v1486 = vsub.s32 0, %v1485
    %v1487 = vrot.slane %v1482, %v1486
    %v1489 = vadd.f32 %v1478, %v1487
    %v1490 = vadd.f32 %v1479, %v1487
    %v1491 = vadd.f32 %v1480, %v1487
    %v1492 = vadd.f32 %v1481, %v1487
    %v1493 = vmax.f32 %v1489, 0.0
    %v1494 = vmax.f32 %v1490, 0.0
    %v1495 = vmax.f32 %v1491, 0.0
    %v1496 = vmax.f32 %v1492, 0.0
    %v1497 = vadd.f32 %v1493, %v1494
    %v1498 = vadd.f32 %v1497, %v1495
    %v1499 = vadd.f32 %v1498, %v1496
    %v1500 = vld [vmem:[%s7] sm:$0xff]
    %v1501 = vld [vmem:[%s7 + $0x8] sm:$0xff]
    %v1502 = vld [vmem:[%s7 + $0x10] sm:$0xff]
    %v1503 = vld [vmem:[%s7 + $0x18] sm:$0xff]
    %v1504 = vld [vmem:[%s7 + $0x20] sm:$0xff]
    %v1505 = vld [vmem:[%s7 + $0x28] sm:$0xff]
    %v1506 = vld [vmem:[%s7 + $0x30] sm:$0xff]
    %v1507 = vld [vmem:[%s7 + $0x38] sm:$0xff]
    %v1508 = vld [vmem:[%s7 + $0x40] sm:$0xff]
    %v1509 = vld [vmem:[%s7 + $0x48] sm:$0xff]
    %v1510 = vld [vmem:[%s7 + $0x50] sm:$0xff]
    %v1511 = vld [vmem:[%s7 + $0x58] sm:$0xff]
    %v1512 = vld [vmem:[%s7 + $0x60] sm:$0xff]
    %v1513 = vld [vmem:[%s7 + $0x68] sm:$0xff]
    %v1514 = vld [vmem:[%s7 + $0x70] sm:$0xff]
    %v1515 = vld [vmem:[%s7 + $0x78] sm:$0xff]
    %1516 = vmatprep.subr.mxu0 0.0
    %1517 = vmatpush1.msra.mxu0 %v1500
    %1518 = vmatprep.subr.mxu0 0.0
    %1519 = vmatpush1.msra.mxu0 %v1501
    %1520 = vmatprep.subr.mxu0 0.0
    %1521 = vmatpush1.msra.mxu0 %v1502
    %1522 = vmatprep.subr.mxu0 0.0
    %1523 = vmatpush1.msra.mxu0 %v1503
    %1524 = vmatprep.subr.mxu0 0.0
    %1525 = vmatpush1.msra.mxu0 %v1504
    %1526 = vmatprep.subr.mxu0 0.0
    %1527 = vmatpush1.msra.mxu0 %v1505
    %1528 = vmatprep.subr.mxu0 0.0
    %1529 = vmatpush1.msra.mxu0 %v1506
    %1530 = vmatprep.subr.mxu0 0.0
    %1531 = vmatpush1.msra.mxu0 %v1507
    %1532 = vmatprep.subr.mxu0 0.0
    %1533 = vmatpush1.msra.mxu0 %v1508
    %1534 = vmatprep.subr.mxu0 0.0
    %1535 = vmatpush1.msra.mxu0 %v1509
    %1536 = vmatprep.subr.mxu0 0.0
    %1537 = vmatpush1.msra.mxu0 %v1510
    %1538 = vmatprep.subr.mxu0 0.0
    %1539 = vmatpush1.msra.mxu0 %v1511
    %1540 = vmatprep.subr.mxu0 0.0
    %1541 = vmatpush1.msra.mxu0 %v1512
    %1542 = vmatprep.subr.mxu0 0.0
    %1543 = vmatpush1.msra.mxu0 %v1513
    %1544 = vmatprep.subr.mxu0 0.0
    %1545 = vmatpush1.msra.mxu0 %v1514
    %1546 = vmatprep.subr.mxu0 0.0
    %1547 = vmatpush1.msra.mxu0 %v1515
    %1548 = vmatprep.subr.mxu0 0.0
    %1549 = vmatpush1.msra.mxu0 0.0
    %1550 = vmatprep.subr.mxu0 0.0
    %1551 = vmatpush1.msra.mxu0 0.0
    %1552 = vmatprep.subr.mxu0 0.0
    %1553 = vmatpush1.msra.mxu0 0.0
    %1554 = vmatprep.subr.mxu0 0.0
    %1555 = vmatpush1.msra.mxu0 0.0
    %1556 = vmatprep.subr.mxu0 0.0
    %1557 = vmatpush1.msra.mxu0 0.0
    %1558 = vmatprep.subr.mxu0 0.0
    %1559 = vmatpush1.msra.mxu0 0.0
    %1560 = vmatprep.subr.mxu0 0.0
    %1561 = vmatpush1.msra.mxu0 0.0
    %1562 = vmatprep.subr.mxu0 0.0
    %1563 = vmatpush1.msra.mxu0 0.0
    %1564 = vmatprep.subr.mxu0 0.0
    %1565 = vmatpush1.msra.mxu0 0.0
    %1566 = vmatprep.subr.mxu0 0.0
    %1567 = vmatpush1.msra.mxu0 0.0
    %1568 = vmatprep.subr.mxu0 0.0
    %1569 = vmatpush1.msra.mxu0 0.0
    %1570 = vmatprep.subr.mxu0 0.0
    %1571 = vmatpush1.msra.mxu0 0.0
    %1572 = vmatprep.subr.mxu0 0.0
    %1573 = vmatpush1.msra.mxu0 0.0
    %1574 = vmatprep.subr.mxu0 0.0
    %1575 = vmatpush1.msra.mxu0 0.0
    %1576 = vmatprep.subr.mxu0 0.0
    %1577 = vmatpush1.msra.mxu0 0.0
    %1578 = vmatprep.subr.mxu0 0.0
    %1579 = vmatpush1.msra.mxu0 0.0
    %1580 = vmatprep.mubr.f32.mxu0 0.0
    %1581 = vmatmul.mubr.f32.gmra.mrb[0].mxu0 %v1499
    %v1582 = vpop.f32.mrb[0].mxu0
    %v1583 = vadd.f32 0.0, %v1582
    %v1584 = vpop.f32.mrb[0].mxu0
    %1585 = vdwg.mxu0
    %vm1586 = vcmask 80896
    %1587 = vst.msk [vmem:[%s8] sm:$0xff] %vm1586, %v1583
    // Predicated region
    $region38: #{mnist_cnn_forward.1} parent=1 // pred_check
      _
    $region39: #{mnist_cnn_forward.1} parent=1 // pred_check_branch
      %1589 = sbr.rel (0) target = $region41
    $region40: #{mnist_cnn_forward.1} parent=1 // pred_region
      _
    $region41: #{mnist_cnn_forward.1} parent=1 // pred_fallthru
      _
    // Predicated region
    $region42: #{mnist_cnn_forward.1} parent=1 // pred_check
      _
    $region43: #{mnist_cnn_forward.1} parent=1 // pred_check_branch
      %1591 = sbr.rel (0) target = $region45
    $region44: #{mnist_cnn_forward.1} parent=1 // pred_region
      _
    $region45: #{mnist_cnn_forward.1} parent=1 // pred_fallthru
      _
    %1592 = vsyncpa [#allocation3], 1

</llo_original>
